<compile_context>
chip_gen: v6e
topology: v6e:2x2x1
jax: 0.10.0
libtpu: 0.0.40
codegen_flags: <defaults>
</compile_context>

<pallas_src>
import jax
import jax.numpy as jnp
from jax.experimental import pallas as pl
from jax.experimental.pallas import tpu as pltpu


def cnn_td_kernel(p_ref, w_ref, b_ref, o_ref):
    """One block of TN (batch*time) images per grid step.

    p_ref: (TN, H*W, 9*C) bf16   im2col patch slab (K is the last, lane dim)
    w_ref: (9*C, C_out)   bf16   fused 3x3 conv weight (taps folded into K)
    b_ref: (1, C_out)     f32    bias
    o_ref: (TN, C_out)    f32    pooled features (written once per block)
    """
    TN, HW, K = p_ref.shape
    C_out = w_ref.shape[1]

    # Single fused matmul over all TN images and all 9 taps:
    # (TN*HW, 9*C) x (9*C, C_out), bf16 operands, f32 accumulation on the MXU.
    patches = p_ref[...].reshape(TN * HW, K)
    acc = jnp.dot(patches, w_ref[...], preferred_element_type=jnp.float32)

    acc = acc + b_ref[...]           # bias (broadcast (1, C_out))
    acc = jnp.maximum(acc, 0.0)      # ReLU

    # Global average pool over the spatial axis, one slab store per block.
    feat = jnp.mean(acc.reshape(TN, HW, C_out), axis=1)   # (TN, C_out)
    o_ref[...] = feat.astype(o_ref.dtype)


def _pick_tile(n, max_tile=8):
    """Largest divisor of n that is <= max_tile (keeps >=2 grid blocks for n>8)."""
    for t in range(min(max_tile, n), 0, -1):
        if n % t == 0:
            return t
    return 1


def ga_net_features(x, w, b):
    """x: (B, T, C, H, W) float32; w: (C_out, C, 3, 3); b: (C_out,).

    Returns (B, T, C_out) features (TimeDistributed CNN forward).
    """
    B, T, C, H, W = x.shape
    C_out = w.shape[0]
    N = B * T
    HW = H * W
    K = 9 * C

    # TimeDistributed reshape + NCHW -> NHWC + SAME pad + im2col (host-side glue).
    # Patch K index order is (kh, kw, c), matching the weight reshape below.
    # TODO(synk): for realistic pretrained-CNN inputs (e.g. 224x224x3) do the
    # halo handling / im2col inside the kernel to avoid the 9x HBM expansion
    # of the patch slab and the extra pad pass.
    xt = x.reshape(N, C, H, W).transpose(0, 2, 3, 1)          # (N, H, W, C)
    xp = jnp.pad(xt, ((0, 0), (1, 1), (1, 1), (0, 0)))        # (N, H+2, W+2, C)
    patches = jnp.concatenate(
        [xp[:, kh:kh + H, kw:kw + W, :] for kh in range(3) for kw in range(3)],
        axis=-1)                                              # (N, H, W, 9*C)
    patches = patches.reshape(N, HW, K).astype(jnp.bfloat16)

    # (C_out, C, 3, 3) -> (kh, kw, c, C_out) -> (9*C, C_out), order matches patches.
    wk = jnp.transpose(w, (2, 3, 1, 0)).reshape(K, C_out).astype(jnp.bfloat16)
    b2 = b.reshape(1, C_out).astype(jnp.float32)

    TN = _pick_tile(N, 8)
    grid = (N // TN,)

    out = pl.pallas_call(
        cnn_td_kernel,
        out_shape=jax.ShapeDtypeStruct((N, C_out), jnp.float32),
        grid_spec=pltpu.PrefetchScalarGridSpec(
            num_scalar_prefetch=0,
            grid=grid,
            in_specs=[
                pl.BlockSpec((TN, HW, K), lambda n: (n, 0, 0)),
                pl.BlockSpec((K, C_out), lambda n: (0, 0)),
                pl.BlockSpec((1, C_out), lambda n: (0, 0)),
            ],
            out_specs=pl.BlockSpec((TN, C_out), lambda n: (n, 0)),
        ),
        compiler_params=pltpu.CompilerParams(
            dimension_semantics=("parallel",)),
    )(patches, wk, b2)

    return out.reshape(B, T, C_out)


def ref_forward(x, w, b):
    """Pure-JAX f32 reference of the same forward (for correctness check)."""
    B, T, C, H, W = x.shape
    xr = x.reshape(B * T, C, H, W)
    y = jax.lax.conv_general_dilated(
        xr, w, window_strides=(1, 1), padding="SAME",
        dimension_numbers=("NCHW", "OIHW", "NCHW"))
    y = y + b[None, :, None, None]
    y = jnp.maximum(y, 0.0)
    feat = y.mean(axis=(2, 3))
    return feat.reshape(B, T, -1)


if __name__ == "__main__":
    B, T, C, H, W = 2, 8, 4, 16, 16
    C_out = 32

    key = jax.random.PRNGKey(0)
    kx, kw, kb = jax.random.split(key, 3)
    x = jax.random.normal(kx, (B, T, C, H, W), jnp.float32)
    w = jax.random.normal(kw, (C_out, C, 3, 3), jnp.float32) * 0.1
    b = jax.random.normal(kb, (C_out,), jnp.float32) * 0.1

    out = jax.block_until_ready(ga_net_features(x, w, b))
    ref = jax.block_until_ready(ref_forward(x, w, b))

    assert out.shape == (B, T, C_out), out.shape
    # bf16 matmul operands (f32 accumulate) vs. the f32 reference -> relaxed tol.
    assert jnp.allclose(out, ref, atol=2e-2, rtol=2e-2), \
        float(jnp.max(jnp.abs(out - ref)))

    print("KERNEL_OK")
</pallas_src>

<mosaic_0001>
module attributes {stable_mosaic.version = 11 : i64} {
  func.func @cnn_td_kernel(%arg0: i32, %arg1: memref<8x256x36xbf16, #tpu.memory_space<vmem>>, %arg2: memref<36x32xbf16, #tpu.memory_space<vmem>>, %arg3: memref<1x32xf32, #tpu.memory_space<vmem>>, %arg4: memref<8x32xf32, #tpu.memory_space<vmem>>) attributes {dimension_semantics = [#tpu.dimension_semantics<parallel>], iteration_bounds = array<i64: 2>, scalar_prefetch = 0 : i64, scratch_operands = 0 : i64, tpu.core_type = #tpu.core_type<tc>, window_params = [{transform_indices = @transform_0, window_bounds = array<i64: 8, 256, 36>}, {pipeline_mode = #tpu.pipeline_mode<synchronous>, transform_indices = @transform_1, window_bounds = array<i64: 36, 32>}, {pipeline_mode = #tpu.pipeline_mode<synchronous>, transform_indices = @transform_2, window_bounds = array<i64: 1, 32>}, {transform_indices = @transform_3, window_bounds = array<i64: 8, 32>}]} {
    %c0 = arith.constant 0 : index
    %c0_0 = arith.constant 0 : index
    %c0_1 = arith.constant 0 : index
    %0 = vector.load %arg1[%c0, %c0_0, %c0_1] : memref<8x256x36xbf16, #tpu.memory_space<vmem>>, vector<8x256x36xbf16>
    %1 = vector.shape_cast %0 : vector<8x256x36xbf16> to vector<2048x36xbf16>
    %c0_2 = arith.constant 0 : index
    %c0_3 = arith.constant 0 : index
    %2 = vector.load %arg2[%c0_2, %c0_3] : memref<36x32xbf16, #tpu.memory_space<vmem>>, vector<36x32xbf16>
    %cst = arith.constant dense<0.000000e+00> : vector<2048x32xf32>
    %3 = tpu.matmul %1, %2, %cst {dimension_numbers = #tpu.dot_dimension_numbers<[1], [0], [0], [1], [0, 0, 1, 1], [], []>} : vector<2048x36xbf16>, vector<36x32xbf16>, vector<2048x32xf32> -> vector<2048x32xf32>
    %c0_4 = arith.constant 0 : index
    %c0_5 = arith.constant 0 : index
    %4 = vector.load %arg3[%c0_4, %c0_5] : memref<1x32xf32, #tpu.memory_space<vmem>>, vector<1x32xf32>
    %5 = vector.broadcast %4 : vector<1x32xf32> to vector<2048x32xf32>
    %6 = arith.addf %3, %5 : vector<2048x32xf32>
    %cst_6 = arith.constant 0.000000e+00 : f32
    %7 = vector.broadcast %cst_6 : f32 to vector<2048x32xf32>
    %8 = arith.maximumf %6, %7 : vector<2048x32xf32>
    %9 = vector.shape_cast %8 : vector<2048x32xf32> to vector<8x256x32xf32>
    %cst_7 = arith.constant dense<0.000000e+00> : vector<8x32xf32>
    %10 = vector.multi_reduction <add>, %9, %cst_7 [1] : vector<8x256x32xf32> to vector<8x32xf32>
    %cst_8 = arith.constant 2.560000e+02 : f32
    %11 = vector.broadcast %cst_8 : f32 to vector<8x32xf32>
    %12 = arith.divf %10, %11 : vector<8x32xf32>
    %c0_9 = arith.constant 0 : index
    %c0_10 = arith.constant 0 : index
    %13 = vector.load %arg4[%c0_9, %c0_10] : memref<8x32xf32, #tpu.memory_space<vmem>>, vector<8x32xf32>
    tpu.vector_store %arg4[%c0_9, %c0_10], %12 {strides = array<i32>} : memref<8x32xf32, #tpu.memory_space<vmem>>, vector<8x32xf32>,
    return
  }
  func.func @transform_0(%arg0: i32) -> (i32, i32, i32) {
    %c0_i32 = arith.constant 0 : i32
    %c0_i32_0 = arith.constant 0 : i32
    %c0_i32_1 = arith.constant 0 : i32
    return %arg0, %c0_i32, %c0_i32_0 : i32, i32, i32
  }
  func.func @transform_1(%arg0: i32) -> (i32, i32) {
    %c0_i32 = arith.constant 0 : i32
    %c0_i32_0 = arith.constant 0 : i32
    %c0_i32_1 = arith.constant 0 : i32
    return %c0_i32, %c0_i32_0 : i32, i32
  }
  func.func @transform_2(%arg0: i32) -> (i32, i32) {
    %c0_i32 = arith.constant 0 : i32
    %c0_i32_0 = arith.constant 0 : i32
    %c0_i32_1 = arith.constant 0 : i32
    return %c0_i32, %c0_i32_0 : i32, i32
  }
  func.func @transform_3(%arg0: i32) -> (i32, i32) {
    %c0_i32 = arith.constant 0 : i32
    %c0_i32_0 = arith.constant 0 : i32
    return %arg0, %c0_i32 : i32, i32
  }
}

</mosaic_0001>

<llo_original>
// kernel: tpu_custom_call.1
$region0: #{tpu_custom_call.1}
  #allocation0 [shape = 'u32[]', space=smem, size = 0x4, offset = 0x4, fixed_abs, tag = 'smem constant byte address 0x4 - core index']
  #allocation1 [shape = 'u32[144,128]{1,0:T(1,128)}', space=vmem, size = 0x12000, scoped, tag = 'internal scratch']
  %s0 = inlined_call_operand.vmem [shape: bf16[16,256,36], index: 0, kind: input, shape index: {}]
  %s1 = inlined_call_operand.vmem [shape: bf16[36,32], index: 1, kind: input, shape index: {}]
  %s2 = inlined_call_operand.vmem [shape: f32[1,32], index: 2, kind: input, shape index: {}]
  %s3 = inlined_call_operand.hbm [shape: f32[16,32], index: 3, kind: output, shape index: {}]
  %s4 = sld [smem:[#allocation0]]
  $region45: #{tpu_custom_call.1} parent=0
    _
  %s6 = ssub.s32 1, %s4
  %s7 = scalar_select 0, %s6, %s4
  $region1: #{tpu_custom_call.1} parent=0
    #allocation2 [shape = 'u8[8192]{0}', space=vmem, size = 0x2000, scoped, tag = 'output window, operand 0']
    #allocation3 [shape = 's32[2]{0}', space=sflag, size = 0x8, scoped, tag = 'scoped memory for tpu_custom_call.1']
    %8 = vsyncpa [#allocation3], 0
    %s9 = scalar_lea.sflag [#allocation3], 1
    %10 = vsyncpa %s9, 0
    loop: start=0, step=1, limit=4
    $region2: #{tpu_custom_call.1} parent=1 // loop_pre_header
      _
    $region3: #{tpu_custom_call.1} parent=1 // loop_header
      %s12 = sphi 0, %s16
      %p13 = scmp.ge.s32.totalorder %s12, 4
      %s22 = sphi 0, %s24
      %s25 = sphi 0, %s22
      %s26 = sphi 0, %s25
      %s42 = sphi 0, %s26
      %s46 = sphi 0, %s46
      %s48 = sphi 0, %s46
      %s49 = sphi 0, %s48
      %s63 = sphi 0, %s49
      %s67 = sphi 0, %s67
      %s69 = sphi 0, %s67
      %s70 = sphi 0, %s69
      %s84 = sphi 0, %s70
      %s90 = sphi 0, %s92
      %s93 = sphi 0, %s90
      %s94 = sphi 0, %s93
      %s110 = sphi 0, %s94
    $region4: #{tpu_custom_call.1} parent=1 // loop_header_branch
      %15 = sbr.rel (%p13) target = $region8
    $region5: #{tpu_custom_call.1} parent=1 // loop_body
      %s17 = ssub.s32 %s12, 1
      %s18 = ssub.s32 %s12, 2
      %s19 = sadd.s32 %s12, 1
      %s20 = ssub.s32 %s12, %s19
      %p21 = scmp.eq.s32.totalorder %s20, 0
      %s23 = sadd.s32 %s22, 1
      %s24 = scalar_select %p21, %s22, %s23
      %p27 = pneg %p21
      %p28 = scmp.eq.s32.totalorder %s12, 1
      %p29 = por %p27, %p28
      %p30 = scmp.ne.s32.totalorder %s22, %s25
      %p31 = scmp.eq.s32.totalorder %s12, 0
      %p32 = por %p30, %p31
      %p33 = scmp.ne.s32.totalorder %s22, %s25
      %p34 = scmp.eq.s32.totalorder %s17, 1
      %p35 = por %p33, %p34
      %p36 = scmp.ne.s32.totalorder %s25, %s26
      %p37 = scmp.eq.s32.totalorder %s17, 0
      %p38 = por %p36, %p37
      %p39 = scmp.ne.s32.totalorder %s25, %s26
      %p40 = scmp.eq.s32.totalorder %s18, 1
      %p41 = por %p39, %p40
      %p43 = scmp.ne.s32.totalorder %s26, %s42
      %p44 = scmp.eq.s32.totalorder %s18, 0
      %p45 = por %p43, %p44
      %s47 = sadd.s32 %s46, 1
      %p50 = scmp.eq.s32.totalorder %s12, 1
      %p51 = scmp.ne.s32.totalorder %s46, %s48
      %p52 = scmp.eq.s32.totalorder %s12, 0
      %p53 = por %p51, %p52
      %p54 = scmp.ne.s32.totalorder %s46, %s48
      %p55 = scmp.eq.s32.totalorder %s17, 1
      %p56 = por %p54, %p55
      %p57 = scmp.ne.s32.totalorder %s48, %s49
      %p58 = scmp.eq.s32.totalorder %s17, 0
      %p59 = por %p57, %p58
      %p60 = scmp.ne.s32.totalorder %s48, %s49
      %p61 = scmp.eq.s32.totalorder %s18, 1
      %p62 = por %p60, %p61
      %p64 = scmp.ne.s32.totalorder %s49, %s63
      %p65 = scmp.eq.s32.totalorder %s18, 0
      %p66 = por %p64, %p65
      %s68 = sadd.s32 %s67, 1
      %p71 = scmp.eq.s32.totalorder %s12, 1
      %p72 = scmp.ne.s32.totalorder %s67, %s69
      %p73 = scmp.eq.s32.totalorder %s12, 0
      %p74 = por %p72, %p73
      %p75 = scmp.ne.s32.totalorder %s67, %s69
      %p76 = scmp.eq.s32.totalorder %s17, 1
      %p77 = por %p75, %p76
      %p78 = scmp.ne.s32.totalorder %s69, %s70
      %p79 = scmp.eq.s32.totalorder %s17, 0
      %p80 = por %p78, %p79
      %p81 = scmp.ne.s32.totalorder %s69, %s70
      %p82 = scmp.eq.s32.totalorder %s18, 1
      %p83 = por %p81, %p82
      %p85 = scmp.ne.s32.totalorder %s70, %s84
      %p86 = scmp.eq.s32.totalorder %s18, 0
      %p87 = por %p85, %p86
      %s88 = ssub.s32 %s12, %s19
      %p89 = scmp.eq.s32.totalorder %s88, 0
      %s91 = sadd.s32 %s90, 1
      %s92 = scalar_select %p89, %s90, %s91
      %p95 = pneg %p89
      %p96 = scmp.eq.s32.totalorder %s12, 1
      %p97 = por %p95, %p96
      %p98 = scmp.ne.s32.totalorder %s90, %s93
      %p99 = scmp.eq.s32.totalorder %s12, 0
      %p100 = por %p98, %p99
      %p101 = scmp.ne.s32.totalorder %s90, %s93
      %p102 = scmp.eq.s32.totalorder %s17, 1
      %p103 = por %p101, %p102
      %p104 = scmp.ne.s32.totalorder %s93, %s94
      %p105 = scmp.eq.s32.totalorder %s17, 0
      %p106 = por %p104, %p105
      %p107 = scmp.ne.s32.totalorder %s93, %s94
      %p108 = scmp.eq.s32.totalorder %s18, 1
      %p109 = por %p107, %p108
      %p111 = scmp.ne.s32.totalorder %s94, %s110
      %p112 = scmp.eq.s32.totalorder %s18, 0
      %p113 = por %p111, %p112
      %p114 = scmp.le.s32.totalorder 1, %s12
      %p115 = scmp.lt.s32.totalorder %s12, 3
      %p116 = pnand %p114, %p115
      %p117 = pneg %p116
      // Predicated region
      $region9: #{tpu_custom_call.1} parent=5 // pred_check
        _
      $region10: #{tpu_custom_call.1} parent=5 // pred_check_branch
        %119 = sbr.rel (%p116) target = $region12
      $region11: #{tpu_custom_call.1} parent=5 // pred_region
        %s120 = ssub.s32 %s12, 1
        // Predicated region
        $region13: #{tpu_custom_call.1} parent=11 // pred_check
          %p121 = pneg %p59
        $region14: #{tpu_custom_call.1} parent=11 // pred_check_branch
          %123 = sbr.rel (%p121) target = $region16
        $region15: #{tpu_custom_call.1} parent=11 // pred_region
          _
        $region16: #{tpu_custom_call.1} parent=11 // pred_fallthru
          _
        // Predicated region
        $region17: #{tpu_custom_call.1} parent=11 // pred_check
          %p124 = pneg %p80
        $region18: #{tpu_custom_call.1} parent=11 // pred_check_branch
          %126 = sbr.rel (%p124) target = $region20
        $region19: #{tpu_custom_call.1} parent=11 // pred_region
          _
        $region20: #{tpu_custom_call.1} parent=11 // pred_fallthru
          _
      $region12: #{tpu_custom_call.1} parent=5 // pred_fallthru
        _
      %p127 = scmp.lt.s32.totalorder %s12, 2
      // Predicated region
      $region21: #{tpu_custom_call.1} parent=5 // pred_check
        %p128 = pneg %p127
      $region22: #{tpu_custom_call.1} parent=5 // pred_check_branch
        %130 = sbr.rel (%p128) target = $region24
      $region23: #{tpu_custom_call.1} parent=5 // pred_region
        // Predicated region
        $region25: #{tpu_custom_call.1} parent=23 // pred_check
          %p131 = pneg %p32
        $region26: #{tpu_custom_call.1} parent=23 // pred_check_branch
          %133 = sbr.rel (%p131) target = $region28
        $region27: #{tpu_custom_call.1} parent=23 // pred_region
          %s134 = smul.u32 8, %s12
          %p135 = scmp.lt.s32.totalorder %s134, 15
          %s136 = scalar_select %p135, %s134, 15
          %s137 = smul.addr %s136, 32
          %s138 = smul.addr %s137, 4
          %s139 = scalar_lea.vmem %s0, %s138
          %s140 = smul.u32 8, %s12
        $region28: #{tpu_custom_call.1} parent=23 // pred_fallthru
          _
      $region24: #{tpu_custom_call.1} parent=5 // pred_fallthru
        _
      %p141 = scmp.le.s32.totalorder 1, %s12
      %p142 = scmp.lt.s32.totalorder %s12, 3
      %p143 = pnand %p141, %p142
      %p144 = pneg %p143
      // Predicated region
      $region29: #{tpu_custom_call.1} parent=5 // pred_check
        _
      $region30: #{tpu_custom_call.1} parent=5 // pred_check_branch
        %146 = sbr.rel (%p143) target = $region32
      $region31: #{tpu_custom_call.1} parent=5 // pred_region
        %s147 = ssub.s32 %s12, 1
        %s148 = smul.u32 8, %s17
        %p149 = scmp.lt.s32.totalorder %s148, 15
        %s150 = scalar_select %p149, %s148, 15
        %s151 = smul.addr %s150, 32
        %s152 = smul.addr %s151, 4
        %s153 = scalar_lea.vmem %s0, %s152
        %p154 = pneg %p38
        %p155 = pneg %p35
        %p156 = pneg %p59
        %p157 = pneg %p56
        %p158 = pneg %p80
        %p159 = pneg %p77
        %p160 = pneg %p106
        %p161 = pneg %p103
        %s162 = sand.u32 %s93, 1
        %s163 = scalar_lea.sflag [#allocation3], %s162
        %s164 = sand.u32 %s93, 1
        %s165 = smul.addr %s164, 8
        %s166 = scalar_lea.vmem [#allocation2], %s165
        %s167 = smul.u32 8, %s17
        %p168 = scmp.lt.s32.totalorder %s167, 15
        %s169 = scalar_select %p168, %s167, 15
        %s170 = smul.addr %s169, 32
        %s171 = smul.addr %s170, 4
        %s172 = scalar_lea.vmem %s0, %s171
        %s173 = smul.u32 8, %s17
        %v175 = vld [vmem:[%s172] sm:$0xf]
        %v176 = vld [vmem:[%s172 + $0x4] sm:$0xf]
        %v177 = vld [vmem:[%s172 + $0x8] sm:$0xf]
        %v178 = vld [vmem:[%s172 + $0xc] sm:$0xf]
        %v179 = vld [vmem:[%s172 + $0x10] sm:$0xf]
        %v180 = vld [vmem:[%s172 + $0x14] sm:$0xf]
        %v181 = vld [vmem:[%s172 + $0x18] sm:$0xf]
        %v182 = vld [vmem:[%s172 + $0x1c] sm:$0xf]
        %v183 = vld [vmem:[%s172 + $0x20] sm:$0xf]
        %v184 = vld [vmem:[%s172 + $0x24] sm:$0xf]
        %v185 = vld [vmem:[%s172 + $0x28] sm:$0xf]
        %v186 = vld [vmem:[%s172 + $0x2c] sm:$0xf]
        %v187 = vld [vmem:[%s172 + $0x30] sm:$0xf]
        %v188 = vld [vmem:[%s172 + $0x34] sm:$0xf]
        %v189 = vld [vmem:[%s172 + $0x38] sm:$0xf]
        %v190 = vld [vmem:[%s172 + $0x3c] sm:$0xf]
        %v191 = vld [vmem:[%s172 + $0x40] sm:$0xf]
        %v192 = vld [vmem:[%s172 + $0x44] sm:$0xf]
        %v193 = vld [vmem:[%s172 + $0x48] sm:$0xf]
        %v194 = vld [vmem:[%s172 + $0x4c] sm:$0xf]
        %v195 = vld [vmem:[%s172 + $0x50] sm:$0xf]
        %v196 = vld [vmem:[%s172 + $0x54] sm:$0xf]
        %v197 = vld [vmem:[%s172 + $0x58] sm:$0xf]
        %v198 = vld [vmem:[%s172 + $0x5c] sm:$0xf]
        %v199 = vld [vmem:[%s172 + $0x60] sm:$0xf]
        %v200 = vld [vmem:[%s172 + $0x64] sm:$0xf]
        %v201 = vld [vmem:[%s172 + $0x68] sm:$0xf]
        %v202 = vld [vmem:[%s172 + $0x6c] sm:$0xf]
        %v203 = vld [vmem:[%s172 + $0x70] sm:$0xf]
        %v204 = vld [vmem:[%s172 + $0x74] sm:$0xf]
        %v205 = vld [vmem:[%s172 + $0x78] sm:$0xf]
        %v206 = vld [vmem:[%s172 + $0x7c] sm:$0xf]
        %v207 = vld [vmem:[%s172 + $0x80] sm:$0xf]
        %v208 = vld [vmem:[%s172 + $0x84] sm:$0xf]
        %v209 = vld [vmem:[%s172 + $0x88] sm:$0xf]
        %v210 = vld [vmem:[%s172 + $0x8c] sm:$0xf]
        %v211 = vld [vmem:[%s172 + $0x90] sm:$0xf]
        %v212 = vld [vmem:[%s172 + $0x94] sm:$0xf]
        %v213 = vld [vmem:[%s172 + $0x98] sm:$0xf]
        %v214 = vld [vmem:[%s172 + $0x9c] sm:$0xf]
        %v215 = vld [vmem:[%s172 + $0xa0] sm:$0xf]
        %v216 = vld [vmem:[%s172 + $0xa4] sm:$0xf]
        %v217 = vld [vmem:[%s172 + $0xa8] sm:$0xf]
        %v218 = vld [vmem:[%s172 + $0xac] sm:$0xf]
        %v219 = vld [vmem:[%s172 + $0xb0] sm:$0xf]
        %v220 = vld [vmem:[%s172 + $0xb4] sm:$0xf]
        %v221 = vld [vmem:[%s172 + $0xb8] sm:$0xf]
        %v222 = vld [vmem:[%s172 + $0xbc] sm:$0xf]
        %v223 = vld [vmem:[%s172 + $0xc0] sm:$0xf]
        %v224 = vld [vmem:[%s172 + $0xc4] sm:$0xf]
        %v225 = vld [vmem:[%s172 + $0xc8] sm:$0xf]
        %v226 = vld [vmem:[%s172 + $0xcc] sm:$0xf]
        %v227 = vld [vmem:[%s172 + $0xd0] sm:$0xf]
        %v228 = vld [vmem:[%s172 + $0xd4] sm:$0xf]
        %v229 = vld [vmem:[%s172 + $0xd8] sm:$0xf]
        %v230 = vld [vmem:[%s172 + $0xdc] sm:$0xf]
        %v231 = vld [vmem:[%s172 + $0xe0] sm:$0xf]
        %v232 = vld [vmem:[%s172 + $0xe4] sm:$0xf]
        %v233 = vld [vmem:[%s172 + $0xe8] sm:$0xf]
        %v234 = vld [vmem:[%s172 + $0xec] sm:$0xf]
        %v235 = vld [vmem:[%s172 + $0xf0] sm:$0xf]
        %v236 = vld [vmem:[%s172 + $0xf4] sm:$0xf]
        %v237 = vld [vmem:[%s172 + $0xf8] sm:$0xf]
        %v238 = vld [vmem:[%s172 + $0xfc] sm:$0xf]
        %v239 = vld [vmem:[%s172 + $0x100] sm:$0xf]
        %v240 = vld [vmem:[%s172 + $0x104] sm:$0xf]
        %v241 = vld [vmem:[%s172 + $0x108] sm:$0xf]
        %v242 = vld [vmem:[%s172 + $0x10c] sm:$0xf]
        %v243 = vld [vmem:[%s172 + $0x110] sm:$0xf]
        %v244 = vld [vmem:[%s172 + $0x114] sm:$0xf]
        %v245 = vld [vmem:[%s172 + $0x118] sm:$0xf]
        %v246 = vld [vmem:[%s172 + $0x11c] sm:$0xf]
        %v247 = vld [vmem:[%s172 + $0x120] sm:$0xf]
        %v248 = vld [vmem:[%s172 + $0x124] sm:$0xf]
        %v249 = vld [vmem:[%s172 + $0x128] sm:$0xf]
        %v250 = vld [vmem:[%s172 + $0x12c] sm:$0xf]
        %v251 = vld [vmem:[%s172 + $0x130] sm:$0xf]
        %v252 = vld [vmem:[%s172 + $0x134] sm:$0xf]
        %v253 = vld [vmem:[%s172 + $0x138] sm:$0xf]
        %v254 = vld [vmem:[%s172 + $0x13c] sm:$0xf]
        %v255 = vld [vmem:[%s172 + $0x140] sm:$0xf]
        %v256 = vld [vmem:[%s172 + $0x144] sm:$0xf]
        %v257 = vld [vmem:[%s172 + $0x148] sm:$0xf]
        %v258 = vld [vmem:[%s172 + $0x14c] sm:$0xf]
        %v259 = vld [vmem:[%s172 + $0x150] sm:$0xf]
        %v260 = vld [vmem:[%s172 + $0x154] sm:$0xf]
        %v261 = vld [vmem:[%s172 + $0x158] sm:$0xf]
        %v262 = vld [vmem:[%s172 + $0x15c] sm:$0xf]
        %v263 = vld [vmem:[%s172 + $0x160] sm:$0xf]
        %v264 = vld [vmem:[%s172 + $0x164] sm:$0xf]
        %v265 = vld [vmem:[%s172 + $0x168] sm:$0xf]
        %v266 = vld [vmem:[%s172 + $0x16c] sm:$0xf]
        %v267 = vld [vmem:[%s172 + $0x170] sm:$0xf]
        %v268 = vld [vmem:[%s172 + $0x174] sm:$0xf]
        %v269 = vld [vmem:[%s172 + $0x178] sm:$0xf]
        %v270 = vld [vmem:[%s172 + $0x17c] sm:$0xf]
        %v271 = vld [vmem:[%s172 + $0x180] sm:$0xf]
        %v272 = vld [vmem:[%s172 + $0x184] sm:$0xf]
        %v273 = vld [vmem:[%s172 + $0x188] sm:$0xf]
        %v274 = vld [vmem:[%s172 + $0x18c] sm:$0xf]
        %v275 = vld [vmem:[%s172 + $0x190] sm:$0xf]
        %v276 = vld [vmem:[%s172 + $0x194] sm:$0xf]
        %v277 = vld [vmem:[%s172 + $0x198] sm:$0xf]
        %v278 = vld [vmem:[%s172 + $0x19c] sm:$0xf]
        %v279 = vld [vmem:[%s172 + $0x1a0] sm:$0xf]
        %v280 = vld [vmem:[%s172 + $0x1a4] sm:$0xf]
        %v281 = vld [vmem:[%s172 + $0x1a8] sm:$0xf]
        %v282 = vld [vmem:[%s172 + $0x1ac] sm:$0xf]
        %v283 = vld [vmem:[%s172 + $0x1b0] sm:$0xf]
        %v284 = vld [vmem:[%s172 + $0x1b4] sm:$0xf]
        %v285 = vld [vmem:[%s172 + $0x1b8] sm:$0xf]
        %v286 = vld [vmem:[%s172 + $0x1bc] sm:$0xf]
        %v287 = vld [vmem:[%s172 + $0x1c0] sm:$0xf]
        %v288 = vld [vmem:[%s172 + $0x1c4] sm:$0xf]
        %v289 = vld [vmem:[%s172 + $0x1c8] sm:$0xf]
        %v290 = vld [vmem:[%s172 + $0x1cc] sm:$0xf]
        %v291 = vld [vmem:[%s172 + $0x1d0] sm:$0xf]
        %v292 = vld [vmem:[%s172 + $0x1d4] sm:$0xf]
        %v293 = vld [vmem:[%s172 + $0x1d8] sm:$0xf]
        %v294 = vld [vmem:[%s172 + $0x1dc] sm:$0xf]
        %v295 = vld [vmem:[%s172 + $0x1e0] sm:$0xf]
        %v296 = vld [vmem:[%s172 + $0x1e4] sm:$0xf]
        %v297 = vld [vmem:[%s172 + $0x1e8] sm:$0xf]
        %v298 = vld [vmem:[%s172 + $0x1ec] sm:$0xf]
        %v299 = vld [vmem:[%s172 + $0x1f0] sm:$0xf]
        %v300 = vld [vmem:[%s172 + $0x1f4] sm:$0xf]
        %v301 = vld [vmem:[%s172 + $0x1f8] sm:$0xf]
        %v302 = vld [vmem:[%s172 + $0x1fc] sm:$0xf]
        %v303 = vld [vmem:[%s172 + $0x200] sm:$0xf]
        %v304 = vld [vmem:[%s172 + $0x204] sm:$0xf]
        %v305 = vld [vmem:[%s172 + $0x208] sm:$0xf]
        %v306 = vld [vmem:[%s172 + $0x20c] sm:$0xf]
        %v307 = vld [vmem:[%s172 + $0x210] sm:$0xf]
        %v308 = vld [vmem:[%s172 + $0x214] sm:$0xf]
        %v309 = vld [vmem:[%s172 + $0x218] sm:$0xf]
        %v310 = vld [vmem:[%s172 + $0x21c] sm:$0xf]
        %v311 = vld [vmem:[%s172 + $0x220] sm:$0xf]
        %v312 = vld [vmem:[%s172 + $0x224] sm:$0xf]
        %v313 = vld [vmem:[%s172 + $0x228] sm:$0xf]
        %v314 = vld [vmem:[%s172 + $0x22c] sm:$0xf]
        %v315 = vld [vmem:[%s172 + $0x230] sm:$0xf]
        %v316 = vld [vmem:[%s172 + $0x234] sm:$0xf]
        %v317 = vld [vmem:[%s172 + $0x238] sm:$0xf]
        %v318 = vld [vmem:[%s172 + $0x23c] sm:$0xf]
        %v319 = vld [vmem:[%s172 + $0x240] sm:$0xf]
        %v320 = vld [vmem:[%s172 + $0x244] sm:$0xf]
        %v321 = vld [vmem:[%s172 + $0x248] sm:$0xf]
        %v322 = vld [vmem:[%s172 + $0x24c] sm:$0xf]
        %v323 = vld [vmem:[%s172 + $0x250] sm:$0xf]
        %v324 = vld [vmem:[%s172 + $0x254] sm:$0xf]
        %v325 = vld [vmem:[%s172 + $0x258] sm:$0xf]
        %v326 = vld [vmem:[%s172 + $0x25c] sm:$0xf]
        %v327 = vld [vmem:[%s172 + $0x260] sm:$0xf]
        %v328 = vld [vmem:[%s172 + $0x264] sm:$0xf]
        %v329 = vld [vmem:[%s172 + $0x268] sm:$0xf]
        %v330 = vld [vmem:[%s172 + $0x26c] sm:$0xf]
        %v331 = vld [vmem:[%s172 + $0x270] sm:$0xf]
        %v332 = vld [vmem:[%s172 + $0x274] sm:$0xf]
        %v333 = vld [vmem:[%s172 + $0x278] sm:$0xf]
        %v334 = vld [vmem:[%s172 + $0x27c] sm:$0xf]
        %v335 = vld [vmem:[%s172 + $0x280] sm:$0xf]
        %v336 = vld [vmem:[%s172 + $0x284] sm:$0xf]
        %v337 = vld [vmem:[%s172 + $0x288] sm:$0xf]
        %v338 = vld [vmem:[%s172 + $0x28c] sm:$0xf]
        %v339 = vld [vmem:[%s172 + $0x290] sm:$0xf]
        %v340 = vld [vmem:[%s172 + $0x294] sm:$0xf]
        %v341 = vld [vmem:[%s172 + $0x298] sm:$0xf]
        %v342 = vld [vmem:[%s172 + $0x29c] sm:$0xf]
        %v343 = vld [vmem:[%s172 + $0x2a0] sm:$0xf]
        %v344 = vld [vmem:[%s172 + $0x2a4] sm:$0xf]
        %v345 = vld [vmem:[%s172 + $0x2a8] sm:$0xf]
        %v346 = vld [vmem:[%s172 + $0x2ac] sm:$0xf]
        %v347 = vld [vmem:[%s172 + $0x2b0] sm:$0xf]
        %v348 = vld [vmem:[%s172 + $0x2b4] sm:$0xf]
        %v349 = vld [vmem:[%s172 + $0x2b8] sm:$0xf]
        %v350 = vld [vmem:[%s172 + $0x2bc] sm:$0xf]
        %v351 = vld [vmem:[%s172 + $0x2c0] sm:$0xf]
        %v352 = vld [vmem:[%s172 + $0x2c4] sm:$0xf]
        %v353 = vld [vmem:[%s172 + $0x2c8] sm:$0xf]
        %v354 = vld [vmem:[%s172 + $0x2cc] sm:$0xf]
        %v355 = vld [vmem:[%s172 + $0x2d0] sm:$0xf]
        %v356 = vld [vmem:[%s172 + $0x2d4] sm:$0xf]
        %v357 = vld [vmem:[%s172 + $0x2d8] sm:$0xf]
        %v358 = vld [vmem:[%s172 + $0x2dc] sm:$0xf]
        %v359 = vld [vmem:[%s172 + $0x2e0] sm:$0xf]
        %v360 = vld [vmem:[%s172 + $0x2e4] sm:$0xf]
        %v361 = vld [vmem:[%s172 + $0x2e8] sm:$0xf]
        %v362 = vld [vmem:[%s172 + $0x2ec] sm:$0xf]
        %v363 = vld [vmem:[%s172 + $0x2f0] sm:$0xf]
        %v364 = vld [vmem:[%s172 + $0x2f4] sm:$0xf]
        %v365 = vld [vmem:[%s172 + $0x2f8] sm:$0xf]
        %v366 = vld [vmem:[%s172 + $0x2fc] sm:$0xf]
        %v367 = vld [vmem:[%s172 + $0x300] sm:$0xf]
        %v368 = vld [vmem:[%s172 + $0x304] sm:$0xf]
        %v369 = vld [vmem:[%s172 + $0x308] sm:$0xf]
        %v370 = vld [vmem:[%s172 + $0x30c] sm:$0xf]
        %v371 = vld [vmem:[%s172 + $0x310] sm:$0xf]
        %v372 = vld [vmem:[%s172 + $0x314] sm:$0xf]
        %v373 = vld [vmem:[%s172 + $0x318] sm:$0xf]
        %v374 = vld [vmem:[%s172 + $0x31c] sm:$0xf]
        %v375 = vld [vmem:[%s172 + $0x320] sm:$0xf]
        %v376 = vld [vmem:[%s172 + $0x324] sm:$0xf]
        %v377 = vld [vmem:[%s172 + $0x328] sm:$0xf]
        %v378 = vld [vmem:[%s172 + $0x32c] sm:$0xf]
        %v379 = vld [vmem:[%s172 + $0x330] sm:$0xf]
        %v380 = vld [vmem:[%s172 + $0x334] sm:$0xf]
        %v381 = vld [vmem:[%s172 + $0x338] sm:$0xf]
        %v382 = vld [vmem:[%s172 + $0x33c] sm:$0xf]
        %v383 = vld [vmem:[%s172 + $0x340] sm:$0xf]
        %v384 = vld [vmem:[%s172 + $0x344] sm:$0xf]
        %v385 = vld [vmem:[%s172 + $0x348] sm:$0xf]
        %v386 = vld [vmem:[%s172 + $0x34c] sm:$0xf]
        %v387 = vld [vmem:[%s172 + $0x350] sm:$0xf]
        %v388 = vld [vmem:[%s172 + $0x354] sm:$0xf]
        %v389 = vld [vmem:[%s172 + $0x358] sm:$0xf]
        %v390 = vld [vmem:[%s172 + $0x35c] sm:$0xf]
        %v391 = vld [vmem:[%s172 + $0x360] sm:$0xf]
        %v392 = vld [vmem:[%s172 + $0x364] sm:$0xf]
        %v393 = vld [vmem:[%s172 + $0x368] sm:$0xf]
        %v394 = vld [vmem:[%s172 + $0x36c] sm:$0xf]
        %v395 = vld [vmem:[%s172 + $0x370] sm:$0xf]
        %v396 = vld [vmem:[%s172 + $0x374] sm:$0xf]
        %v397 = vld [vmem:[%s172 + $0x378] sm:$0xf]
        %v398 = vld [vmem:[%s172 + $0x37c] sm:$0xf]
        %v399 = vld [vmem:[%s172 + $0x380] sm:$0xf]
        %v400 = vld [vmem:[%s172 + $0x384] sm:$0xf]
        %v401 = vld [vmem:[%s172 + $0x388] sm:$0xf]
        %v402 = vld [vmem:[%s172 + $0x38c] sm:$0xf]
        %v403 = vld [vmem:[%s172 + $0x390] sm:$0xf]
        %v404 = vld [vmem:[%s172 + $0x394] sm:$0xf]
        %v405 = vld [vmem:[%s172 + $0x398] sm:$0xf]
        %v406 = vld [vmem:[%s172 + $0x39c] sm:$0xf]
        %v407 = vld [vmem:[%s172 + $0x3a0] sm:$0xf]
        %v408 = vld [vmem:[%s172 + $0x3a4] sm:$0xf]
        %v409 = vld [vmem:[%s172 + $0x3a8] sm:$0xf]
        %v410 = vld [vmem:[%s172 + $0x3ac] sm:$0xf]
        %v411 = vld [vmem:[%s172 + $0x3b0] sm:$0xf]
        %v412 = vld [vmem:[%s172 + $0x3b4] sm:$0xf]
        %v413 = vld [vmem:[%s172 + $0x3b8] sm:$0xf]
        %v414 = vld [vmem:[%s172 + $0x3bc] sm:$0xf]
        %v415 = vld [vmem:[%s172 + $0x3c0] sm:$0xf]
        %v416 = vld [vmem:[%s172 + $0x3c4] sm:$0xf]
        %v417 = vld [vmem:[%s172 + $0x3c8] sm:$0xf]
        %v418 = vld [vmem:[%s172 + $0x3cc] sm:$0xf]
        %v419 = vld [vmem:[%s172 + $0x3d0] sm:$0xf]
        %v420 = vld [vmem:[%s172 + $0x3d4] sm:$0xf]
        %v421 = vld [vmem:[%s172 + $0x3d8] sm:$0xf]
        %v422 = vld [vmem:[%s172 + $0x3dc] sm:$0xf]
        %v423 = vld [vmem:[%s172 + $0x3e0] sm:$0xf]
        %v424 = vld [vmem:[%s172 + $0x3e4] sm:$0xf]
        %v425 = vld [vmem:[%s172 + $0x3e8] sm:$0xf]
        %v426 = vld [vmem:[%s172 + $0x3ec] sm:$0xf]
        %v427 = vld [vmem:[%s172 + $0x3f0] sm:$0xf]
        %v428 = vld [vmem:[%s172 + $0x3f4] sm:$0xf]
        %v429 = vld [vmem:[%s172 + $0x3f8] sm:$0xf]
        %v430 = vld [vmem:[%s172 + $0x3fc] sm:$0xf]
        %v431 = vld [vmem:[%s1] sm:$0xf]
        %v432 = vld [vmem:[%s1 + $0x4] sm:$0xf]
        %v433 = vld [vmem:[%s1 + $0x8] sm:$0xf]
        %v434 = vld [vmem:[%s1 + $0xc] sm:$0xf]
        %v435 = vld [vmem:[%s1 + $0x10] sm:$0x3]
        %v436 = vld [vmem:[%s2] sm:$0x1]
        %v438 = vlaneseq
        %v439 = vshrl.u32 %v438, 7
        %v440 = vsub.s32 0, %v439
        %v441 = vrot.slane %v436, %v440
        %v699 = vunpack.c.l.b16 %v175
        %v700 = vunpack.c.l.b16 %v176
        %v701 = vunpack.c.l.b16 %v177
        %v702 = vunpack.c.l.b16 %v178
        %v703 = vunpack.c.l.b16 %v179
        %v704 = vunpack.c.l.b16 %v180
        %v705 = vunpack.c.l.b16 %v181
        %v706 = vunpack.c.l.b16 %v182
        %v707 = vunpack.c.l.b16 %v183
        %v708 = vunpack.c.l.b16 %v184
        %v709 = vunpack.c.l.b16 %v185
        %v710 = vunpack.c.l.b16 %v186
        %v711 = vunpack.c.l.b16 %v187
        %v712 = vunpack.c.l.b16 %v188
        %v713 = vunpack.c.l.b16 %v189
        %v714 = vunpack.c.l.b16 %v190
        %v715 = vunpack.c.l.b16 %v191
        %v716 = vunpack.c.l.b16 %v192
        %v717 = vunpack.c.l.b16 %v193
        %v718 = vunpack.c.l.b16 %v194
        %v719 = vunpack.c.l.b16 %v195
        %v720 = vunpack.c.l.b16 %v196
        %v721 = vunpack.c.l.b16 %v197
        %v722 = vunpack.c.l.b16 %v198
        %v723 = vunpack.c.l.b16 %v199
        %v724 = vunpack.c.l.b16 %v200
        %v725 = vunpack.c.l.b16 %v201
        %v726 = vunpack.c.l.b16 %v202
        %v727 = vunpack.c.l.b16 %v203
        %v728 = vunpack.c.l.b16 %v204
        %v729 = vunpack.c.l.b16 %v205
        %v730 = vunpack.c.l.b16 %v206
        %v731 = vunpack.c.l.b16 %v207
        %v732 = vunpack.c.l.b16 %v208
        %v733 = vunpack.c.l.b16 %v209
        %v734 = vunpack.c.l.b16 %v210
        %v735 = vunpack.c.l.b16 %v211
        %v736 = vunpack.c.l.b16 %v212
        %v737 = vunpack.c.l.b16 %v213
        %v738 = vunpack.c.l.b16 %v214
        %v739 = vunpack.c.l.b16 %v215
        %v740 = vunpack.c.l.b16 %v216
        %v741 = vunpack.c.l.b16 %v217
        %v742 = vunpack.c.l.b16 %v218
        %v743 = vunpack.c.l.b16 %v219
        %v744 = vunpack.c.l.b16 %v220
        %v745 = vunpack.c.l.b16 %v221
        %v746 = vunpack.c.l.b16 %v222
        %v747 = vunpack.c.l.b16 %v223
        %v748 = vunpack.c.l.b16 %v224
        %v749 = vunpack.c.l.b16 %v225
        %v750 = vunpack.c.l.b16 %v226
        %v751 = vunpack.c.l.b16 %v227
        %v752 = vunpack.c.l.b16 %v228
        %v753 = vunpack.c.l.b16 %v229
        %v754 = vunpack.c.l.b16 %v230
        %v755 = vunpack.c.l.b16 %v231
        %v756 = vunpack.c.l.b16 %v232
        %v757 = vunpack.c.l.b16 %v233
        %v758 = vunpack.c.l.b16 %v234
        %v759 = vunpack.c.l.b16 %v235
        %v760 = vunpack.c.l.b16 %v236
        %v761 = vunpack.c.l.b16 %v237
        %v762 = vunpack.c.l.b16 %v238
        %v763 = vunpack.c.l.b16 %v239
        %v764 = vunpack.c.l.b16 %v240
        %v765 = vunpack.c.l.b16 %v241
        %v766 = vunpack.c.l.b16 %v242
        %v767 = vunpack.c.l.b16 %v243
        %v768 = vunpack.c.l.b16 %v244
        %v769 = vunpack.c.l.b16 %v245
        %v770 = vunpack.c.l.b16 %v246
        %v771 = vunpack.c.l.b16 %v247
        %v772 = vunpack.c.l.b16 %v248
        %v773 = vunpack.c.l.b16 %v249
        %v774 = vunpack.c.l.b16 %v250
        %v775 = vunpack.c.l.b16 %v251
        %v776 = vunpack.c.l.b16 %v252
        %v777 = vunpack.c.l.b16 %v253
        %v778 = vunpack.c.l.b16 %v254
        %v779 = vunpack.c.l.b16 %v255
        %v780 = vunpack.c.l.b16 %v256
        %v781 = vunpack.c.l.b16 %v257
        %v782 = vunpack.c.l.b16 %v258
        %v783 = vunpack.c.l.b16 %v259
        %v784 = vunpack.c.l.b16 %v260
        %v785 = vunpack.c.l.b16 %v261
        %v786 = vunpack.c.l.b16 %v262
        %v787 = vunpack.c.l.b16 %v263
        %v788 = vunpack.c.l.b16 %v264
        %v789 = vunpack.c.l.b16 %v265
        %v790 = vunpack.c.l.b16 %v266
        %v791 = vunpack.c.l.b16 %v267
        %v792 = vunpack.c.l.b16 %v268
        %v793 = vunpack.c.l.b16 %v269
        %v794 = vunpack.c.l.b16 %v270
        %v795 = vunpack.c.l.b16 %v271
        %v796 = vunpack.c.l.b16 %v272
        %v797 = vunpack.c.l.b16 %v273
        %v798 = vunpack.c.l.b16 %v274
        %v799 = vunpack.c.l.b16 %v275
        %v800 = vunpack.c.l.b16 %v276
        %v801 = vunpack.c.l.b16 %v277
        %v802 = vunpack.c.l.b16 %v278
        %v803 = vunpack.c.l.b16 %v279
        %v804 = vunpack.c.l.b16 %v280
        %v805 = vunpack.c.l.b16 %v281
        %v806 = vunpack.c.l.b16 %v282
        %v807 = vunpack.c.l.b16 %v283
        %v808 = vunpack.c.l.b16 %v284
        %v809 = vunpack.c.l.b16 %v285
        %v810 = vunpack.c.l.b16 %v286
        %v811 = vunpack.c.l.b16 %v287
        %v812 = vunpack.c.l.b16 %v288
        %v813 = vunpack.c.l.b16 %v289
        %v814 = vunpack.c.l.b16 %v290
        %v815 = vunpack.c.l.b16 %v291
        %v816 = vunpack.c.l.b16 %v292
        %v817 = vunpack.c.l.b16 %v293
        %v818 = vunpack.c.l.b16 %v294
        %v819 = vunpack.c.l.b16 %v295
        %v820 = vunpack.c.l.b16 %v296
        %v821 = vunpack.c.l.b16 %v297
        %v822 = vunpack.c.l.b16 %v298
        %v823 = vunpack.c.l.b16 %v299
        %v824 = vunpack.c.l.b16 %v300
        %v825 = vunpack.c.l.b16 %v301
        %v826 = vunpack.c.l.b16 %v302
        %v827 = vunpack.c.l.b16 %v303
        %v828 = vunpack.c.l.b16 %v304
        %v829 = vunpack.c.l.b16 %v305
        %v830 = vunpack.c.l.b16 %v306
        %v831 = vunpack.c.l.b16 %v307
        %v832 = vunpack.c.l.b16 %v308
        %v833 = vunpack.c.l.b16 %v309
        %v834 = vunpack.c.l.b16 %v310
        %v835 = vunpack.c.l.b16 %v311
        %v836 = vunpack.c.l.b16 %v312
        %v837 = vunpack.c.l.b16 %v313
        %v838 = vunpack.c.l.b16 %v314
        %v839 = vunpack.c.l.b16 %v315
        %v840 = vunpack.c.l.b16 %v316
        %v841 = vunpack.c.l.b16 %v317
        %v842 = vunpack.c.l.b16 %v318
        %v843 = vunpack.c.l.b16 %v319
        %v844 = vunpack.c.l.b16 %v320
        %v845 = vunpack.c.l.b16 %v321
        %v846 = vunpack.c.l.b16 %v322
        %v847 = vunpack.c.l.b16 %v323
        %v848 = vunpack.c.l.b16 %v324
        %v849 = vunpack.c.l.b16 %v325
        %v850 = vunpack.c.l.b16 %v326
        %v851 = vunpack.c.l.b16 %v327
        %v852 = vunpack.c.l.b16 %v328
        %v853 = vunpack.c.l.b16 %v329
        %v854 = vunpack.c.l.b16 %v330
        %v855 = vunpack.c.l.b16 %v331
        %v856 = vunpack.c.l.b16 %v332
        %v857 = vunpack.c.l.b16 %v333
        %v858 = vunpack.c.l.b16 %v334
        %v859 = vunpack.c.l.b16 %v335
        %v860 = vunpack.c.l.b16 %v336
        %v861 = vunpack.c.l.b16 %v337
        %v862 = vunpack.c.l.b16 %v338
        %v863 = vunpack.c.l.b16 %v339
        %v864 = vunpack.c.l.b16 %v340
        %v865 = vunpack.c.l.b16 %v341
        %v866 = vunpack.c.l.b16 %v342
        %v867 = vunpack.c.l.b16 %v343
        %v868 = vunpack.c.l.b16 %v344
        %v869 = vunpack.c.l.b16 %v345
        %v870 = vunpack.c.l.b16 %v346
        %v871 = vunpack.c.l.b16 %v347
        %v872 = vunpack.c.l.b16 %v348
        %v873 = vunpack.c.l.b16 %v349
        %v874 = vunpack.c.l.b16 %v350
        %v875 = vunpack.c.l.b16 %v351
        %v876 = vunpack.c.l.b16 %v352
        %v877 = vunpack.c.l.b16 %v353
        %v878 = vunpack.c.l.b16 %v354
        %v879 = vunpack.c.l.b16 %v355
        %v880 = vunpack.c.l.b16 %v356
        %v881 = vunpack.c.l.b16 %v357
        %v882 = vunpack.c.l.b16 %v358
        %v883 = vunpack.c.l.b16 %v359
        %v884 = vunpack.c.l.b16 %v360
        %v885 = vunpack.c.l.b16 %v361
        %v886 = vunpack.c.l.b16 %v362
        %v887 = vunpack.c.l.b16 %v363
        %v888 = vunpack.c.l.b16 %v364
        %v889 = vunpack.c.l.b16 %v365
        %v890 = vunpack.c.l.b16 %v366
        %v891 = vunpack.c.l.b16 %v367
        %v892 = vunpack.c.l.b16 %v368
        %v893 = vunpack.c.l.b16 %v369
        %v894 = vunpack.c.l.b16 %v370
        %v895 = vunpack.c.l.b16 %v371
        %v896 = vunpack.c.l.b16 %v372
        %v897 = vunpack.c.l.b16 %v373
        %v898 = vunpack.c.l.b16 %v374
        %v899 = vunpack.c.l.b16 %v375
        %v900 = vunpack.c.l.b16 %v376
        %v901 = vunpack.c.l.b16 %v377
        %v902 = vunpack.c.l.b16 %v378
        %v903 = vunpack.c.l.b16 %v379
        %v904 = vunpack.c.l.b16 %v380
        %v905 = vunpack.c.l.b16 %v381
        %v906 = vunpack.c.l.b16 %v382
        %v907 = vunpack.c.l.b16 %v383
        %v908 = vunpack.c.l.b16 %v384
        %v909 = vunpack.c.l.b16 %v385
        %v910 = vunpack.c.l.b16 %v386
        %v911 = vunpack.c.l.b16 %v387
        %v912 = vunpack.c.l.b16 %v388
        %v913 = vunpack.c.l.b16 %v389
        %v914 = vunpack.c.l.b16 %v390
        %v915 = vunpack.c.l.b16 %v391
        %v916 = vunpack.c.l.b16 %v392
        %v917 = vunpack.c.l.b16 %v393
        %v918 = vunpack.c.l.b16 %v394
        %v919 = vunpack.c.l.b16 %v395
        %v920 = vunpack.c.l.b16 %v396
        %v921 = vunpack.c.l.b16 %v397
        %v922 = vunpack.c.l.b16 %v398
        %v923 = vunpack.c.l.b16 %v399
        %v924 = vunpack.c.l.b16 %v400
        %v925 = vunpack.c.l.b16 %v401
        %v926 = vunpack.c.l.b16 %v402
        %v927 = vunpack.c.l.b16 %v403
        %v928 = vunpack.c.l.b16 %v404
        %v929 = vunpack.c.l.b16 %v405
        %v930 = vunpack.c.l.b16 %v406
        %v931 = vunpack.c.l.b16 %v407
        %v932 = vunpack.c.l.b16 %v408
        %v933 = vunpack.c.l.b16 %v409
        %v934 = vunpack.c.l.b16 %v410
        %v935 = vunpack.c.l.b16 %v411
        %v936 = vunpack.c.l.b16 %v412
        %v937 = vunpack.c.l.b16 %v413
        %v938 = vunpack.c.l.b16 %v414
        %v939 = vunpack.c.l.b16 %v415
        %v940 = vunpack.c.l.b16 %v416
        %v941 = vunpack.c.l.b16 %v417
        %v942 = vunpack.c.l.b16 %v418
        %v943 = vunpack.c.l.b16 %v419
        %v944 = vunpack.c.l.b16 %v420
        %v945 = vunpack.c.l.b16 %v421
        %v946 = vunpack.c.l.b16 %v422
        %v947 = vunpack.c.l.b16 %v423
        %v948 = vunpack.c.l.b16 %v424
        %v949 = vunpack.c.l.b16 %v425
        %v950 = vunpack.c.l.b16 %v426
        %v951 = vunpack.c.l.b16 %v427
        %v952 = vunpack.c.l.b16 %v428
        %v953 = vunpack.c.l.b16 %v429
        %v954 = vunpack.c.l.b16 %v430
        %v955 = vpack.c.b16 %v700, %v699
        %v956 = vpack.c.b16 %v702, %v701
        %v957 = vpack.c.b16 %v704, %v703
        %v958 = vpack.c.b16 %v706, %v705
        %v959 = vpack.c.b16 %v708, %v707
        %v960 = vpack.c.b16 %v710, %v709
        %v961 = vpack.c.b16 %v712, %v711
        %v962 = vpack.c.b16 %v714, %v713
        %v963 = vpack.c.b16 %v716, %v715
        %v964 = vpack.c.b16 %v718, %v717
        %v965 = vpack.c.b16 %v720, %v719
        %v966 = vpack.c.b16 %v722, %v721
        %v967 = vpack.c.b16 %v724, %v723
        %v968 = vpack.c.b16 %v726, %v725
        %v969 = vpack.c.b16 %v728, %v727
        %v970 = vpack.c.b16 %v730, %v729
        %v971 = vpack.c.b16 %v732, %v731
        %v972 = vpack.c.b16 %v734, %v733
        %v973 = vpack.c.b16 %v736, %v735
        %v974 = vpack.c.b16 %v738, %v737
        %v975 = vpack.c.b16 %v740, %v739
        %v976 = vpack.c.b16 %v742, %v741
        %v977 = vpack.c.b16 %v744, %v743
        %v978 = vpack.c.b16 %v746, %v745
        %v979 = vpack.c.b16 %v748, %v747
        %v980 = vpack.c.b16 %v750, %v749
        %v981 = vpack.c.b16 %v752, %v751
        %v982 = vpack.c.b16 %v754, %v753
        %v983 = vpack.c.b16 %v756, %v755
        %v984 = vpack.c.b16 %v758, %v757
        %v985 = vpack.c.b16 %v760, %v759
        %v986 = vpack.c.b16 %v762, %v761
        %v987 = vpack.c.b16 %v764, %v763
        %v988 = vpack.c.b16 %v766, %v765
        %v989 = vpack.c.b16 %v768, %v767
        %v990 = vpack.c.b16 %v770, %v769
        %v991 = vpack.c.b16 %v772, %v771
        %v992 = vpack.c.b16 %v774, %v773
        %v993 = vpack.c.b16 %v776, %v775
        %v994 = vpack.c.b16 %v778, %v777
        %v995 = vpack.c.b16 %v780, %v779
        %v996 = vpack.c.b16 %v782, %v781
        %v997 = vpack.c.b16 %v784, %v783
        %v998 = vpack.c.b16 %v786, %v785
        %v999 = vpack.c.b16 %v788, %v787
        %v1000 = vpack.c.b16 %v790, %v789
        %v1001 = vpack.c.b16 %v792, %v791
        %v1002 = vpack.c.b16 %v794, %v793
        %v1003 = vpack.c.b16 %v796, %v795
        %v1004 = vpack.c.b16 %v798, %v797
        %v1005 = vpack.c.b16 %v800, %v799
        %v1006 = vpack.c.b16 %v802, %v801
        %v1007 = vpack.c.b16 %v804, %v803
        %v1008 = vpack.c.b16 %v806, %v805
        %v1009 = vpack.c.b16 %v808, %v807
        %v1010 = vpack.c.b16 %v810, %v809
        %v1011 = vpack.c.b16 %v812, %v811
        %v1012 = vpack.c.b16 %v814, %v813
        %v1013 = vpack.c.b16 %v816, %v815
        %v1014 = vpack.c.b16 %v818, %v817
        %v1015 = vpack.c.b16 %v820, %v819
        %v1016 = vpack.c.b16 %v822, %v821
        %v1017 = vpack.c.b16 %v824, %v823
        %v1018 = vpack.c.b16 %v826, %v825
        %v1019 = vpack.c.b16 %v828, %v827
        %v1020 = vpack.c.b16 %v830, %v829
        %v1021 = vpack.c.b16 %v832, %v831
        %v1022 = vpack.c.b16 %v834, %v833
        %v1023 = vpack.c.b16 %v836, %v835
        %v1024 = vpack.c.b16 %v838, %v837
        %v1025 = vpack.c.b16 %v840, %v839
        %v1026 = vpack.c.b16 %v842, %v841
        %v1027 = vpack.c.b16 %v844, %v843
        %v1028 = vpack.c.b16 %v846, %v845
        %v1029 = vpack.c.b16 %v848, %v847
        %v1030 = vpack.c.b16 %v850, %v849
        %v1031 = vpack.c.b16 %v852, %v851
        %v1032 = vpack.c.b16 %v854, %v853
        %v1033 = vpack.c.b16 %v856, %v855
        %v1034 = vpack.c.b16 %v858, %v857
        %v1035 = vpack.c.b16 %v860, %v859
        %v1036 = vpack.c.b16 %v862, %v861
        %v1037 = vpack.c.b16 %v864, %v863
        %v1038 = vpack.c.b16 %v866, %v865
        %v1039 = vpack.c.b16 %v868, %v867
        %v1040 = vpack.c.b16 %v870, %v869
        %v1041 = vpack.c.b16 %v872, %v871
        %v1042 = vpack.c.b16 %v874, %v873
        %v1043 = vpack.c.b16 %v876, %v875
        %v1044 = vpack.c.b16 %v878, %v877
        %v1045 = vpack.c.b16 %v880, %v879
        %v1046 = vpack.c.b16 %v882, %v881
        %v1047 = vpack.c.b16 %v884, %v883
        %v1048 = vpack.c.b16 %v886, %v885
        %v1049 = vpack.c.b16 %v888, %v887
        %v1050 = vpack.c.b16 %v890, %v889
        %v1051 = vpack.c.b16 %v892, %v891
        %v1052 = vpack.c.b16 %v894, %v893
        %v1053 = vpack.c.b16 %v896, %v895
        %v1054 = vpack.c.b16 %v898, %v897
        %v1055 = vpack.c.b16 %v900, %v899
        %v1056 = vpack.c.b16 %v902, %v901
        %v1057 = vpack.c.b16 %v904, %v903
        %v1058 = vpack.c.b16 %v906, %v905
        %v1059 = vpack.c.b16 %v908, %v907
        %v1060 = vpack.c.b16 %v910, %v909
        %v1061 = vpack.c.b16 %v912, %v911
        %v1062 = vpack.c.b16 %v914, %v913
        %v1063 = vpack.c.b16 %v916, %v915
        %v1064 = vpack.c.b16 %v918, %v917
        %v1065 = vpack.c.b16 %v920, %v919
        %v1066 = vpack.c.b16 %v922, %v921
        %v1067 = vpack.c.b16 %v924, %v923
        %v1068 = vpack.c.b16 %v926, %v925
        %v1069 = vpack.c.b16 %v928, %v927
        %v1070 = vpack.c.b16 %v930, %v929
        %v1071 = vpack.c.b16 %v932, %v931
        %v1072 = vpack.c.b16 %v934, %v933
        %v1073 = vpack.c.b16 %v936, %v935
        %v1074 = vpack.c.b16 %v938, %v937
        %v1075 = vpack.c.b16 %v940, %v939
        %v1076 = vpack.c.b16 %v942, %v941
        %v1077 = vpack.c.b16 %v944, %v943
        %v1078 = vpack.c.b16 %v946, %v945
        %v1079 = vpack.c.b16 %v948, %v947
        %v1080 = vpack.c.b16 %v950, %v949
        %v1081 = vpack.c.b16 %v952, %v951
        %v1082 = vpack.c.b16 %v954, %v953
        %v1088 = vunpack.c.l.b16 %v431
        %v1089 = vunpack.c.l.b16 %v432
        %v1090 = vunpack.c.l.b16 %v433
        %v1091 = vunpack.c.l.b16 %v434
        %v1092 = vunpack.c.l.b16 %v435
        %v1093 = vpack.c.b16 %v1089, %v1088
        %v1094 = vpack.c.b16 %v1091, %v1090
        %v1095 = vpack.c.b16 %v1092, %v1092
        %vm1098 = vcmask 293888
        %v1100 = vsel %vm1098, %v955, 0
        %v1103 = vsel %vm1098, %v956, 0
        %v1106 = vsel %vm1098, %v957, 0
        %v1109 = vsel %vm1098, %v958, 0
        %v1112 = vsel %vm1098, %v959, 0
        %v1115 = vsel %vm1098, %v960, 0
        %v1118 = vsel %vm1098, %v961, 0
        %v1121 = vsel %vm1098, %v962, 0
        %v1124 = vsel %vm1098, %v963, 0
        %v1127 = vsel %vm1098, %v964, 0
        %v1130 = vsel %vm1098, %v965, 0
        %v1133 = vsel %vm1098, %v966, 0
        %v1136 = vsel %vm1098, %v967, 0
        %v1139 = vsel %vm1098, %v968, 0
        %v1142 = vsel %vm1098, %v969, 0
        %v1145 = vsel %vm1098, %v970, 0
        %v1148 = vsel %vm1098, %v971, 0
        %v1151 = vsel %vm1098, %v972, 0
        %v1154 = vsel %vm1098, %v973, 0
        %v1157 = vsel %vm1098, %v974, 0
        %v1160 = vsel %vm1098, %v975, 0
        %v1163 = vsel %vm1098, %v976, 0
        %v1166 = vsel %vm1098, %v977, 0
        %v1169 = vsel %vm1098, %v978, 0
        %v1172 = vsel %vm1098, %v979, 0
        %v1175 = vsel %vm1098, %v980, 0
        %v1178 = vsel %vm1098, %v981, 0
        %v1181 = vsel %vm1098, %v982, 0
        %v1184 = vsel %vm1098, %v983, 0
        %v1187 = vsel %vm1098, %v984, 0
        %v1190 = vsel %vm1098, %v985, 0
        %v1193 = vsel %vm1098, %v986, 0
        %v1196 = vsel %vm1098, %v987, 0
        %v1199 = vsel %vm1098, %v988, 0
        %v1202 = vsel %vm1098, %v989, 0
        %v1205 = vsel %vm1098, %v990, 0
        %v1208 = vsel %vm1098, %v991, 0
        %v1211 = vsel %vm1098, %v992, 0
        %v1214 = vsel %vm1098, %v993, 0
        %v1217 = vsel %vm1098, %v994, 0
        %v1220 = vsel %vm1098, %v995, 0
        %v1223 = vsel %vm1098, %v996, 0
        %v1226 = vsel %vm1098, %v997, 0
        %v1229 = vsel %vm1098, %v998, 0
        %v1232 = vsel %vm1098, %v999, 0
        %v1235 = vsel %vm1098, %v1000, 0
        %v1238 = vsel %vm1098, %v1001, 0
        %v1241 = vsel %vm1098, %v1002, 0
        %v1244 = vsel %vm1098, %v1003, 0
        %v1247 = vsel %vm1098, %v1004, 0
        %v1250 = vsel %vm1098, %v1005, 0
        %v1253 = vsel %vm1098, %v1006, 0
        %v1256 = vsel %vm1098, %v1007, 0
        %v1259 = vsel %vm1098, %v1008, 0
        %v1262 = vsel %vm1098, %v1009, 0
        %v1265 = vsel %vm1098, %v1010, 0
        %v1268 = vsel %vm1098, %v1011, 0
        %v1271 = vsel %vm1098, %v1012, 0
        %v1274 = vsel %vm1098, %v1013, 0
        %v1277 = vsel %vm1098, %v1014, 0
        %v1280 = vsel %vm1098, %v1015, 0
        %v1283 = vsel %vm1098, %v1016, 0
        %v1286 = vsel %vm1098, %v1017, 0
        %v1289 = vsel %vm1098, %v1018, 0
        %v1292 = vsel %vm1098, %v1019, 0
        %v1295 = vsel %vm1098, %v1020, 0
        %v1298 = vsel %vm1098, %v1021, 0
        %v1301 = vsel %vm1098, %v1022, 0
        %v1304 = vsel %vm1098, %v1023, 0
        %v1307 = vsel %vm1098, %v1024, 0
        %v1310 = vsel %vm1098, %v1025, 0
        %v1313 = vsel %vm1098, %v1026, 0
        %v1316 = vsel %vm1098, %v1027, 0
        %v1319 = vsel %vm1098, %v1028, 0
        %v1322 = vsel %vm1098, %v1029, 0
        %v1325 = vsel %vm1098, %v1030, 0
        %v1328 = vsel %vm1098, %v1031, 0
        %v1331 = vsel %vm1098, %v1032, 0
        %v1334 = vsel %vm1098, %v1033, 0
        %v1337 = vsel %vm1098, %v1034, 0
        %v1340 = vsel %vm1098, %v1035, 0
        %v1343 = vsel %vm1098, %v1036, 0
        %v1346 = vsel %vm1098, %v1037, 0
        %v1349 = vsel %vm1098, %v1038, 0
        %v1352 = vsel %vm1098, %v1039, 0
        %v1355 = vsel %vm1098, %v1040, 0
        %v1358 = vsel %vm1098, %v1041, 0
        %v1361 = vsel %vm1098, %v1042, 0
        %v1364 = vsel %vm1098, %v1043, 0
        %v1367 = vsel %vm1098, %v1044, 0
        %v1370 = vsel %vm1098, %v1045, 0
        %v1373 = vsel %vm1098, %v1046, 0
        %v1376 = vsel %vm1098, %v1047, 0
        %v1379 = vsel %vm1098, %v1048, 0
        %v1382 = vsel %vm1098, %v1049, 0
        %v1385 = vsel %vm1098, %v1050, 0
        %v1388 = vsel %vm1098, %v1051, 0
        %v1391 = vsel %vm1098, %v1052, 0
        %v1394 = vsel %vm1098, %v1053, 0
        %v1397 = vsel %vm1098, %v1054, 0
        %v1400 = vsel %vm1098, %v1055, 0
        %v1403 = vsel %vm1098, %v1056, 0
        %v1406 = vsel %vm1098, %v1057, 0
        %v1409 = vsel %vm1098, %v1058, 0
        %v1412 = vsel %vm1098, %v1059, 0
        %v1415 = vsel %vm1098, %v1060, 0
        %v1418 = vsel %vm1098, %v1061, 0
        %v1421 = vsel %vm1098, %v1062, 0
        %v1424 = vsel %vm1098, %v1063, 0
        %v1427 = vsel %vm1098, %v1064, 0
        %v1430 = vsel %vm1098, %v1065, 0
        %v1433 = vsel %vm1098, %v1066, 0
        %v1436 = vsel %vm1098, %v1067, 0
        %v1439 = vsel %vm1098, %v1068, 0
        %v1442 = vsel %vm1098, %v1069, 0
        %v1445 = vsel %vm1098, %v1070, 0
        %v1448 = vsel %vm1098, %v1071, 0
        %v1451 = vsel %vm1098, %v1072, 0
        %v1454 = vsel %vm1098, %v1073, 0
        %v1457 = vsel %vm1098, %v1074, 0
        %v1460 = vsel %vm1098, %v1075, 0
        %v1463 = vsel %vm1098, %v1076, 0
        %v1466 = vsel %vm1098, %v1077, 0
        %v1469 = vsel %vm1098, %v1078, 0
        %v1472 = vsel %vm1098, %v1079, 0
        %v1475 = vsel %vm1098, %v1080, 0
        %v1478 = vsel %vm1098, %v1081, 0
        %v1481 = vsel %vm1098, %v1082, 0
        %vm1483 = vcmask 1041408
        %v1485 = vsel %vm1483, %v1095, 0
        %1487 = vmatprep.subr.bf16.mxu0 0
        %1488 = vmatpush1.bf16.msra.mxu0 0
        %1489 = vmatprep.subr.bf16.mxu0 0
        %1490 = vmatpush1.bf16.msra.mxu0 0
        %1491 = vmatprep.subr.bf16.mxu0 0
        %1492 = vmatpush1.bf16.msra.mxu0 0
        %1493 = vmatprep.subr.bf16.mxu0 0
        %1494 = vmatpush1.bf16.msra.mxu0 0
        %1495 = vmatprep.subr.bf16.mxu0 0
        %1496 = vmatpush1.bf16.msra.mxu0 0
        %1497 = vmatprep.subr.bf16.mxu0 0
        %1498 = vmatpush1.bf16.msra.mxu0 %v1485
        %1499 = vmatprep.subr.bf16.mxu0 0
        %1500 = vmatpush1.bf16.msra.mxu0 %v1094
        %1501 = vmatprep.subr.bf16.mxu0 0
        %1502 = vmatpush1.bf16.msra.mxu0 %v1093
        %1503 = vmatprep.subr.bf16.mxu0 0
        %1504 = vmatpush2.bf16.msra.mxu0 0
        %1505 = vmatprep.subr.bf16.mxu0 0
        %1506 = vmatpush2.bf16.msra.mxu0 0
        %1507 = vmatprep.subr.bf16.mxu0 0
        %1508 = vmatpush2.bf16.msra.mxu0 0
        %1509 = vmatprep.subr.bf16.mxu0 0
        %1510 = vmatpush2.bf16.msra.mxu0 0
        %1511 = vmatprep.subr.bf16.mxu0 0
        %1512 = vmatpush2.bf16.msra.mxu0 0
        %1513 = vmatprep.subr.bf16.mxu0 0
        %1514 = vmatpush2.bf16.msra.mxu0 0
        %1515 = vmatprep.subr.bf16.mxu0 0
        %1516 = vmatpush2.bf16.msra.mxu0 0
        %1517 = vmatprep.subr.bf16.mxu0 0
        %1518 = vmatpush2.bf16.msra.mxu0 0
        %1519 = vmatprep.mubr.bf16.mxu0 0
        %1520 = vmatmul.mubr.bf16.gmra.mxu0 %v1100
        %v1521 = vpop.f32.mrf.mxu0
        %v1522 = vadd.f32 %v441, %v1521
        %v1523 = vpop.f32.mrf.mxu0
        %v1524 = vpop.f32.mrf.mxu0
        %v1525 = vadd.f32 %v441, %v1524
        %v1526 = vpop.f32.mrf.mxu0
        %1527 = vmatprep.mubr.bf16.mxu0 0
        %1528 = vmatmul.mubr.bf16.gmra.mxu0 %v1103
        %v1529 = vpop.f32.mrf.mxu0
        %v1530 = vadd.f32 %v441, %v1529
        %v1531 = vpop.f32.mrf.mxu0
        %v1532 = vpop.f32.mrf.mxu0
        %v1533 = vadd.f32 %v441, %v1532
        %v1534 = vpop.f32.mrf.mxu0
        %1535 = vmatprep.mubr.bf16.mxu0 0
        %1536 = vmatmul.mubr.bf16.gmra.mxu0 %v1106
        %v1537 = vpop.f32.mrf.mxu0
        %v1538 = vadd.f32 %v441, %v1537
        %v1539 = vpop.f32.mrf.mxu0
        %v1540 = vpop.f32.mrf.mxu0
        %v1541 = vadd.f32 %v441, %v1540
        %v1542 = vpop.f32.mrf.mxu0
        %1543 = vmatprep.mubr.bf16.mxu0 0
        %1544 = vmatmul.mubr.bf16.gmra.mxu0 %v1109
        %v1545 = vpop.f32.mrf.mxu0
        %v1546 = vadd.f32 %v441, %v1545
        %v1547 = vpop.f32.mrf.mxu0
        %v1548 = vpop.f32.mrf.mxu0
        %v1549 = vadd.f32 %v441, %v1548
        %v1550 = vpop.f32.mrf.mxu0
        %1551 = vmatprep.mubr.bf16.mxu0 0
        %1552 = vmatmul.mubr.bf16.gmra.mxu0 %v1112
        %v1553 = vpop.f32.mrf.mxu0
        %v1554 = vadd.f32 %v441, %v1553
        %v1555 = vpop.f32.mrf.mxu0
        %v1556 = vpop.f32.mrf.mxu0
        %v1557 = vadd.f32 %v441, %v1556
        %v1558 = vpop.f32.mrf.mxu0
        %1559 = vmatprep.mubr.bf16.mxu0 0
        %1560 = vmatmul.mubr.bf16.gmra.mxu0 %v1115
        %v1561 = vpop.f32.mrf.mxu0
        %v1562 = vadd.f32 %v441, %v1561
        %v1563 = vpop.f32.mrf.mxu0
        %v1564 = vpop.f32.mrf.mxu0
        %v1565 = vadd.f32 %v441, %v1564
        %v1566 = vpop.f32.mrf.mxu0
        %1567 = vmatprep.mubr.bf16.mxu0 0
        %1568 = vmatmul.mubr.bf16.gmra.mxu0 %v1118
        %v1569 = vpop.f32.mrf.mxu0
        %v1570 = vadd.f32 %v441, %v1569
        %v1571 = vpop.f32.mrf.mxu0
        %v1572 = vpop.f32.mrf.mxu0
        %v1573 = vadd.f32 %v441, %v1572
        %v1574 = vpop.f32.mrf.mxu0
        %1575 = vmatprep.mubr.bf16.mxu0 0
        %1576 = vmatmul.mubr.bf16.gmra.mxu0 %v1121
        %v1577 = vpop.f32.mrf.mxu0
        %v1578 = vadd.f32 %v441, %v1577
        %v1579 = vpop.f32.mrf.mxu0
        %v1580 = vpop.f32.mrf.mxu0
        %v1581 = vadd.f32 %v441, %v1580
        %v1582 = vpop.f32.mrf.mxu0
        %1583 = vmatprep.mubr.bf16.mxu0 0
        %1584 = vmatmul.mubr.bf16.gmra.mxu0 %v1124
        %v1585 = vpop.f32.mrf.mxu0
        %v1586 = vadd.f32 %v441, %v1585
        %v1587 = vpop.f32.mrf.mxu0
        %v1588 = vpop.f32.mrf.mxu0
        %v1589 = vadd.f32 %v441, %v1588
        %v1590 = vpop.f32.mrf.mxu0
        %1591 = vmatprep.mubr.bf16.mxu0 0
        %1592 = vmatmul.mubr.bf16.gmra.mxu0 %v1127
        %v1593 = vpop.f32.mrf.mxu0
        %v1594 = vadd.f32 %v441, %v1593
        %v1595 = vpop.f32.mrf.mxu0
        %v1596 = vpop.f32.mrf.mxu0
        %v1597 = vadd.f32 %v441, %v1596
        %v1598 = vpop.f32.mrf.mxu0
        %1599 = vmatprep.mubr.bf16.mxu0 0
        %1600 = vmatmul.mubr.bf16.gmra.mxu0 %v1130
        %v1601 = vpop.f32.mrf.mxu0
        %v1602 = vadd.f32 %v441, %v1601
        %v1603 = vpop.f32.mrf.mxu0
        %v1604 = vpop.f32.mrf.mxu0
        %v1605 = vadd.f32 %v441, %v1604
        %v1606 = vpop.f32.mrf.mxu0
        %1607 = vmatprep.mubr.bf16.mxu0 0
        %1608 = vmatmul.mubr.bf16.gmra.mxu0 %v1133
        %v1609 = vpop.f32.mrf.mxu0
        %v1610 = vadd.f32 %v441, %v1609
        %v1611 = vpop.f32.mrf.mxu0
        %v1612 = vpop.f32.mrf.mxu0
        %v1613 = vadd.f32 %v441, %v1612
        %v1614 = vpop.f32.mrf.mxu0
        %1615 = vmatprep.mubr.bf16.mxu0 0
        %1616 = vmatmul.mubr.bf16.gmra.mxu0 %v1136
        %v1617 = vpop.f32.mrf.mxu0
        %v1618 = vadd.f32 %v441, %v1617
        %v1619 = vpop.f32.mrf.mxu0
        %v1620 = vpop.f32.mrf.mxu0
        %v1621 = vadd.f32 %v441, %v1620
        %v1622 = vpop.f32.mrf.mxu0
        %1623 = vmatprep.mubr.bf16.mxu0 0
        %1624 = vmatmul.mubr.bf16.gmra.mxu0 %v1139
        %v1625 = vpop.f32.mrf.mxu0
        %v1626 = vadd.f32 %v441, %v1625
        %v1627 = vpop.f32.mrf.mxu0
        %v1628 = vpop.f32.mrf.mxu0
        %v1629 = vadd.f32 %v441, %v1628
        %v1630 = vpop.f32.mrf.mxu0
        %1631 = vmatprep.mubr.bf16.mxu0 0
        %1632 = vmatmul.mubr.bf16.gmra.mxu0 %v1142
        %v1633 = vpop.f32.mrf.mxu0
        %v1634 = vadd.f32 %v441, %v1633
        %v1635 = vpop.f32.mrf.mxu0
        %v1636 = vpop.f32.mrf.mxu0
        %v1637 = vadd.f32 %v441, %v1636
        %v1638 = vpop.f32.mrf.mxu0
        %1639 = vmatprep.mubr.bf16.mxu0 0
        %1640 = vmatmul.mubr.bf16.gmra.mxu0 %v1145
        %v1641 = vpop.f32.mrf.mxu0
        %v1642 = vadd.f32 %v441, %v1641
        %v1643 = vpop.f32.mrf.mxu0
        %v1644 = vpop.f32.mrf.mxu0
        %v1645 = vadd.f32 %v441, %v1644
        %v1646 = vpop.f32.mrf.mxu0
        %1647 = vmatprep.mubr.bf16.mxu0 0
        %1648 = vmatmul.mubr.bf16.gmra.mxu0 %v1148
        %v1649 = vpop.f32.mrf.mxu0
        %v1650 = vadd.f32 %v441, %v1649
        %v1651 = vpop.f32.mrf.mxu0
        %v1652 = vpop.f32.mrf.mxu0
        %v1653 = vadd.f32 %v441, %v1652
        %v1654 = vpop.f32.mrf.mxu0
        %1655 = vmatprep.mubr.bf16.mxu0 0
        %1656 = vmatmul.mubr.bf16.gmra.mxu0 %v1151
        %v1657 = vpop.f32.mrf.mxu0
        %v1658 = vadd.f32 %v441, %v1657
        %v1659 = vpop.f32.mrf.mxu0
        %v1660 = vpop.f32.mrf.mxu0
        %v1661 = vadd.f32 %v441, %v1660
        %v1662 = vpop.f32.mrf.mxu0
        %1663 = vmatprep.mubr.bf16.mxu0 0
        %1664 = vmatmul.mubr.bf16.gmra.mxu0 %v1154
        %v1665 = vpop.f32.mrf.mxu0
        %v1666 = vadd.f32 %v441, %v1665
        %v1667 = vpop.f32.mrf.mxu0
        %v1668 = vpop.f32.mrf.mxu0
        %v1669 = vadd.f32 %v441, %v1668
        %v1670 = vpop.f32.mrf.mxu0
        %1671 = vmatprep.mubr.bf16.mxu0 0
        %1672 = vmatmul.mubr.bf16.gmra.mxu0 %v1157
        %v1673 = vpop.f32.mrf.mxu0
        %v1674 = vadd.f32 %v441, %v1673
        %v1675 = vpop.f32.mrf.mxu0
        %v1676 = vpop.f32.mrf.mxu0
        %v1677 = vadd.f32 %v441, %v1676
        %v1678 = vpop.f32.mrf.mxu0
        %1679 = vmatprep.mubr.bf16.mxu0 0
        %1680 = vmatmul.mubr.bf16.gmra.mxu0 %v1160
        %v1681 = vpop.f32.mrf.mxu0
        %v1682 = vadd.f32 %v441, %v1681
        %v1683 = vpop.f32.mrf.mxu0
        %v1684 = vpop.f32.mrf.mxu0
        %v1685 = vadd.f32 %v441, %v1684
        %v1686 = vpop.f32.mrf.mxu0
        %1687 = vmatprep.mubr.bf16.mxu0 0
        %1688 = vmatmul.mubr.bf16.gmra.mxu0 %v1163
        %v1689 = vpop.f32.mrf.mxu0
        %v1690 = vadd.f32 %v441, %v1689
        %v1691 = vpop.f32.mrf.mxu0
        %v1692 = vpop.f32.mrf.mxu0
        %v1693 = vadd.f32 %v441, %v1692
        %v1694 = vpop.f32.mrf.mxu0
        %1695 = vmatprep.mubr.bf16.mxu0 0
        %1696 = vmatmul.mubr.bf16.gmra.mxu0 %v1166
        %v1697 = vpop.f32.mrf.mxu0
        %v1698 = vadd.f32 %v441, %v1697
        %v1699 = vpop.f32.mrf.mxu0
        %v1700 = vpop.f32.mrf.mxu0
        %v1701 = vadd.f32 %v441, %v1700
        %v1702 = vpop.f32.mrf.mxu0
        %1703 = vmatprep.mubr.bf16.mxu0 0
        %1704 = vmatmul.mubr.bf16.gmra.mxu0 %v1169
        %v1705 = vpop.f32.mrf.mxu0
        %v1706 = vadd.f32 %v441, %v1705
        %v1707 = vpop.f32.mrf.mxu0
        %v1708 = vpop.f32.mrf.mxu0
        %v1709 = vadd.f32 %v441, %v1708
        %v1710 = vpop.f32.mrf.mxu0
        %1711 = vmatprep.mubr.bf16.mxu0 0
        %1712 = vmatmul.mubr.bf16.gmra.mxu0 %v1172
        %v1713 = vpop.f32.mrf.mxu0
        %v1714 = vadd.f32 %v441, %v1713
        %v1715 = vpop.f32.mrf.mxu0
        %v1716 = vpop.f32.mrf.mxu0
        %v1717 = vadd.f32 %v441, %v1716
        %v1718 = vpop.f32.mrf.mxu0
        %1719 = vmatprep.mubr.bf16.mxu0 0
        %1720 = vmatmul.mubr.bf16.gmra.mxu0 %v1175
        %v1721 = vpop.f32.mrf.mxu0
        %v1722 = vadd.f32 %v441, %v1721
        %v1723 = vpop.f32.mrf.mxu0
        %v1724 = vpop.f32.mrf.mxu0
        %v1725 = vadd.f32 %v441, %v1724
        %v1726 = vpop.f32.mrf.mxu0
        %1727 = vmatprep.mubr.bf16.mxu0 0
        %1728 = vmatmul.mubr.bf16.gmra.mxu0 %v1178
        %v1729 = vpop.f32.mrf.mxu0
        %v1730 = vadd.f32 %v441, %v1729
        %v1731 = vpop.f32.mrf.mxu0
        %v1732 = vpop.f32.mrf.mxu0
        %v1733 = vadd.f32 %v441, %v1732
        %v1734 = vpop.f32.mrf.mxu0
        %1735 = vmatprep.mubr.bf16.mxu0 0
        %1736 = vmatmul.mubr.bf16.gmra.mxu0 %v1181
        %v1737 = vpop.f32.mrf.mxu0
        %v1738 = vadd.f32 %v441, %v1737
        %v1739 = vpop.f32.mrf.mxu0
        %v1740 = vpop.f32.mrf.mxu0
        %v1741 = vadd.f32 %v441, %v1740
        %v1742 = vpop.f32.mrf.mxu0
        %1743 = vmatprep.mubr.bf16.mxu0 0
        %1744 = vmatmul.mubr.bf16.gmra.mxu0 %v1184
        %v1745 = vpop.f32.mrf.mxu0
        %v1746 = vadd.f32 %v441, %v1745
        %v1747 = vpop.f32.mrf.mxu0
        %v1748 = vpop.f32.mrf.mxu0
        %v1749 = vadd.f32 %v441, %v1748
        %v1750 = vpop.f32.mrf.mxu0
        %1751 = vmatprep.mubr.bf16.mxu0 0
        %1752 = vmatmul.mubr.bf16.gmra.mxu0 %v1187
        %v1753 = vpop.f32.mrf.mxu0
        %v1754 = vadd.f32 %v441, %v1753
        %v1755 = vpop.f32.mrf.mxu0
        %v1756 = vpop.f32.mrf.mxu0
        %v1757 = vadd.f32 %v441, %v1756
        %v1758 = vpop.f32.mrf.mxu0
        %1759 = vmatprep.mubr.bf16.mxu0 0
        %1760 = vmatmul.mubr.bf16.gmra.mxu0 %v1190
        %v1761 = vpop.f32.mrf.mxu0
        %v1762 = vadd.f32 %v441, %v1761
        %v1763 = vpop.f32.mrf.mxu0
        %v1764 = vpop.f32.mrf.mxu0
        %v1765 = vadd.f32 %v441, %v1764
        %v1766 = vpop.f32.mrf.mxu0
        %1767 = vmatprep.mubr.bf16.mxu0 0
        %1768 = vmatmul.mubr.bf16.gmra.mxu0 %v1193
        %v1769 = vpop.f32.mrf.mxu0
        %v1770 = vadd.f32 %v441, %v1769
        %v1771 = vpop.f32.mrf.mxu0
        %v1772 = vpop.f32.mrf.mxu0
        %v1773 = vadd.f32 %v441, %v1772
        %v1774 = vpop.f32.mrf.mxu0
        %1775 = vmatprep.mubr.bf16.mxu0 0
        %1776 = vmatmul.mubr.bf16.gmra.mxu0 %v1196
        %v1777 = vpop.f32.mrf.mxu0
        %v1778 = vadd.f32 %v441, %v1777
        %v1779 = vpop.f32.mrf.mxu0
        %v1780 = vpop.f32.mrf.mxu0
        %v1781 = vadd.f32 %v441, %v1780
        %v1782 = vpop.f32.mrf.mxu0
        %1783 = vmatprep.mubr.bf16.mxu0 0
        %1784 = vmatmul.mubr.bf16.gmra.mxu0 %v1199
        %v1785 = vpop.f32.mrf.mxu0
        %v1786 = vadd.f32 %v441, %v1785
        %v1787 = vpop.f32.mrf.mxu0
        %v1788 = vpop.f32.mrf.mxu0
        %v1789 = vadd.f32 %v441, %v1788
        %v1790 = vpop.f32.mrf.mxu0
        %1791 = vmatprep.mubr.bf16.mxu0 0
        %1792 = vmatmul.mubr.bf16.gmra.mxu0 %v1202
        %v1793 = vpop.f32.mrf.mxu0
        %v1794 = vadd.f32 %v441, %v1793
        %v1795 = vpop.f32.mrf.mxu0
        %v1796 = vpop.f32.mrf.mxu0
        %v1797 = vadd.f32 %v441, %v1796
        %v1798 = vpop.f32.mrf.mxu0
        %1799 = vmatprep.mubr.bf16.mxu0 0
        %1800 = vmatmul.mubr.bf16.gmra.mxu0 %v1205
        %v1801 = vpop.f32.mrf.mxu0
        %v1802 = vadd.f32 %v441, %v1801
        %v1803 = vpop.f32.mrf.mxu0
        %v1804 = vpop.f32.mrf.mxu0
        %v1805 = vadd.f32 %v441, %v1804
        %v1806 = vpop.f32.mrf.mxu0
        %1807 = vmatprep.mubr.bf16.mxu0 0
        %1808 = vmatmul.mubr.bf16.gmra.mxu0 %v1208
        %v1809 = vpop.f32.mrf.mxu0
        %v1810 = vadd.f32 %v441, %v1809
        %v1811 = vpop.f32.mrf.mxu0
        %v1812 = vpop.f32.mrf.mxu0
        %v1813 = vadd.f32 %v441, %v1812
        %v1814 = vpop.f32.mrf.mxu0
        %1815 = vmatprep.mubr.bf16.mxu0 0
        %1816 = vmatmul.mubr.bf16.gmra.mxu0 %v1211
        %v1817 = vpop.f32.mrf.mxu0
        %v1818 = vadd.f32 %v441, %v1817
        %v1819 = vpop.f32.mrf.mxu0
        %v1820 = vpop.f32.mrf.mxu0
        %v1821 = vadd.f32 %v441, %v1820
        %v1822 = vpop.f32.mrf.mxu0
        %1823 = vmatprep.mubr.bf16.mxu0 0
        %1824 = vmatmul.mubr.bf16.gmra.mxu0 %v1214
        %v1825 = vpop.f32.mrf.mxu0
        %v1826 = vadd.f32 %v441, %v1825
        %v1827 = vpop.f32.mrf.mxu0
        %v1828 = vpop.f32.mrf.mxu0
        %v1829 = vadd.f32 %v441, %v1828
        %v1830 = vpop.f32.mrf.mxu0
        %1831 = vmatprep.mubr.bf16.mxu0 0
        %1832 = vmatmul.mubr.bf16.gmra.mxu0 %v1217
        %v1833 = vpop.f32.mrf.mxu0
        %v1834 = vadd.f32 %v441, %v1833
        %v1835 = vpop.f32.mrf.mxu0
        %v1836 = vpop.f32.mrf.mxu0
        %v1837 = vadd.f32 %v441, %v1836
        %v1838 = vpop.f32.mrf.mxu0
        %1839 = vmatprep.mubr.bf16.mxu0 0
        %1840 = vmatmul.mubr.bf16.gmra.mxu0 %v1220
        %v1841 = vpop.f32.mrf.mxu0
        %v1842 = vadd.f32 %v441, %v1841
        %v1843 = vpop.f32.mrf.mxu0
        %v1844 = vpop.f32.mrf.mxu0
        %v1845 = vadd.f32 %v441, %v1844
        %v1846 = vpop.f32.mrf.mxu0
        %1847 = vmatprep.mubr.bf16.mxu0 0
        %1848 = vmatmul.mubr.bf16.gmra.mxu0 %v1223
        %v1849 = vpop.f32.mrf.mxu0
        %v1850 = vadd.f32 %v441, %v1849
        %v1851 = vpop.f32.mrf.mxu0
        %v1852 = vpop.f32.mrf.mxu0
        %v1853 = vadd.f32 %v441, %v1852
        %v1854 = vpop.f32.mrf.mxu0
        %1855 = vmatprep.mubr.bf16.mxu0 0
        %1856 = vmatmul.mubr.bf16.gmra.mxu0 %v1226
        %v1857 = vpop.f32.mrf.mxu0
        %v1858 = vadd.f32 %v441, %v1857
        %v1859 = vpop.f32.mrf.mxu0
        %v1860 = vpop.f32.mrf.mxu0
        %v1861 = vadd.f32 %v441, %v1860
        %v1862 = vpop.f32.mrf.mxu0
        %1863 = vmatprep.mubr.bf16.mxu0 0
        %1864 = vmatmul.mubr.bf16.gmra.mxu0 %v1229
        %v1865 = vpop.f32.mrf.mxu0
        %v1866 = vadd.f32 %v441, %v1865
        %v1867 = vpop.f32.mrf.mxu0
        %v1868 = vpop.f32.mrf.mxu0
        %v1869 = vadd.f32 %v441, %v1868
        %v1870 = vpop.f32.mrf.mxu0
        %1871 = vmatprep.mubr.bf16.mxu0 0
        %1872 = vmatmul.mubr.bf16.gmra.mxu0 %v1232
        %v1873 = vpop.f32.mrf.mxu0
        %v1874 = vadd.f32 %v441, %v1873
        %v1875 = vpop.f32.mrf.mxu0
        %v1876 = vpop.f32.mrf.mxu0
        %v1877 = vadd.f32 %v441, %v1876
        %v1878 = vpop.f32.mrf.mxu0
        %1879 = vmatprep.mubr.bf16.mxu0 0
        %1880 = vmatmul.mubr.bf16.gmra.mxu0 %v1235
        %v1881 = vpop.f32.mrf.mxu0
        %v1882 = vadd.f32 %v441, %v1881
        %v1883 = vpop.f32.mrf.mxu0
        %v1884 = vpop.f32.mrf.mxu0
        %v1885 = vadd.f32 %v441, %v1884
        %v1886 = vpop.f32.mrf.mxu0
        %1887 = vmatprep.mubr.bf16.mxu0 0
        %1888 = vmatmul.mubr.bf16.gmra.mxu0 %v1238
        %v1889 = vpop.f32.mrf.mxu0
        %v1890 = vadd.f32 %v441, %v1889
        %v1891 = vpop.f32.mrf.mxu0
        %v1892 = vpop.f32.mrf.mxu0
        %v1893 = vadd.f32 %v441, %v1892
        %v1894 = vpop.f32.mrf.mxu0
        %1895 = vmatprep.mubr.bf16.mxu0 0
        %1896 = vmatmul.mubr.bf16.gmra.mxu0 %v1241
        %v1897 = vpop.f32.mrf.mxu0
        %v1898 = vadd.f32 %v441, %v1897
        %v1899 = vpop.f32.mrf.mxu0
        %v1900 = vpop.f32.mrf.mxu0
        %v1901 = vadd.f32 %v441, %v1900
        %v1902 = vpop.f32.mrf.mxu0
        %1903 = vmatprep.mubr.bf16.mxu0 0
        %1904 = vmatmul.mubr.bf16.gmra.mxu0 %v1244
        %v1905 = vpop.f32.mrf.mxu0
        %v1906 = vadd.f32 %v441, %v1905
        %v1907 = vpop.f32.mrf.mxu0
        %v1908 = vpop.f32.mrf.mxu0
        %v1909 = vadd.f32 %v441, %v1908
        %v1910 = vpop.f32.mrf.mxu0
        %1911 = vmatprep.mubr.bf16.mxu0 0
        %1912 = vmatmul.mubr.bf16.gmra.mxu0 %v1247
        %v1913 = vpop.f32.mrf.mxu0
        %v1914 = vadd.f32 %v441, %v1913
        %v1915 = vpop.f32.mrf.mxu0
        %v1916 = vpop.f32.mrf.mxu0
        %v1917 = vadd.f32 %v441, %v1916
        %v1918 = vpop.f32.mrf.mxu0
        %1919 = vmatprep.mubr.bf16.mxu0 0
        %1920 = vmatmul.mubr.bf16.gmra.mxu0 %v1250
        %v1921 = vpop.f32.mrf.mxu0
        %v1922 = vadd.f32 %v441, %v1921
        %v1923 = vpop.f32.mrf.mxu0
        %v1924 = vpop.f32.mrf.mxu0
        %v1925 = vadd.f32 %v441, %v1924
        %v1926 = vpop.f32.mrf.mxu0
        %1927 = vmatprep.mubr.bf16.mxu0 0
        %1928 = vmatmul.mubr.bf16.gmra.mxu0 %v1253
        %v1929 = vpop.f32.mrf.mxu0
        %v1930 = vadd.f32 %v441, %v1929
        %v1931 = vpop.f32.mrf.mxu0
        %v1932 = vpop.f32.mrf.mxu0
        %v1933 = vadd.f32 %v441, %v1932
        %v1934 = vpop.f32.mrf.mxu0
        %1935 = vmatprep.mubr.bf16.mxu0 0
        %1936 = vmatmul.mubr.bf16.gmra.mxu0 %v1256
        %v1937 = vpop.f32.mrf.mxu0
        %v1938 = vadd.f32 %v441, %v1937
        %v1939 = vpop.f32.mrf.mxu0
        %v1940 = vpop.f32.mrf.mxu0
        %v1941 = vadd.f32 %v441, %v1940
        %v1942 = vpop.f32.mrf.mxu0
        %1943 = vmatprep.mubr.bf16.mxu0 0
        %1944 = vmatmul.mubr.bf16.gmra.mxu0 %v1259
        %v1945 = vpop.f32.mrf.mxu0
        %v1946 = vadd.f32 %v441, %v1945
        %v1947 = vpop.f32.mrf.mxu0
        %v1948 = vpop.f32.mrf.mxu0
        %v1949 = vadd.f32 %v441, %v1948
        %v1950 = vpop.f32.mrf.mxu0
        %1951 = vmatprep.mubr.bf16.mxu0 0
        %1952 = vmatmul.mubr.bf16.gmra.mxu0 %v1262
        %v1953 = vpop.f32.mrf.mxu0
        %v1954 = vadd.f32 %v441, %v1953
        %v1955 = vpop.f32.mrf.mxu0
        %v1956 = vpop.f32.mrf.mxu0
        %v1957 = vadd.f32 %v441, %v1956
        %v1958 = vpop.f32.mrf.mxu0
        %1959 = vmatprep.mubr.bf16.mxu0 0
        %1960 = vmatmul.mubr.bf16.gmra.mxu0 %v1265
        %v1961 = vpop.f32.mrf.mxu0
        %v1962 = vadd.f32 %v441, %v1961
        %v1963 = vpop.f32.mrf.mxu0
        %v1964 = vpop.f32.mrf.mxu0
        %v1965 = vadd.f32 %v441, %v1964
        %v1966 = vpop.f32.mrf.mxu0
        %1967 = vmatprep.mubr.bf16.mxu0 0
        %1968 = vmatmul.mubr.bf16.gmra.mxu0 %v1268
        %v1969 = vpop.f32.mrf.mxu0
        %v1970 = vadd.f32 %v441, %v1969
        %v1971 = vpop.f32.mrf.mxu0
        %v1972 = vpop.f32.mrf.mxu0
        %v1973 = vadd.f32 %v441, %v1972
        %v1974 = vpop.f32.mrf.mxu0
        %1975 = vmatprep.mubr.bf16.mxu0 0
        %1976 = vmatmul.mubr.bf16.gmra.mxu0 %v1271
        %v1977 = vpop.f32.mrf.mxu0
        %v1978 = vadd.f32 %v441, %v1977
        %v1979 = vpop.f32.mrf.mxu0
        %v1980 = vpop.f32.mrf.mxu0
        %v1981 = vadd.f32 %v441, %v1980
        %v1982 = vpop.f32.mrf.mxu0
        %1983 = vmatprep.mubr.bf16.mxu0 0
        %1984 = vmatmul.mubr.bf16.gmra.mxu0 %v1274
        %v1985 = vpop.f32.mrf.mxu0
        %v1986 = vadd.f32 %v441, %v1985
        %v1987 = vpop.f32.mrf.mxu0
        %v1988 = vpop.f32.mrf.mxu0
        %v1989 = vadd.f32 %v441, %v1988
        %v1990 = vpop.f32.mrf.mxu0
        %1991 = vmatprep.mubr.bf16.mxu0 0
        %1992 = vmatmul.mubr.bf16.gmra.mxu0 %v1277
        %v1993 = vpop.f32.mrf.mxu0
        %v1994 = vadd.f32 %v441, %v1993
        %v1995 = vpop.f32.mrf.mxu0
        %v1996 = vpop.f32.mrf.mxu0
        %v1997 = vadd.f32 %v441, %v1996
        %v1998 = vpop.f32.mrf.mxu0
        %1999 = vmatprep.mubr.bf16.mxu0 0
        %2000 = vmatmul.mubr.bf16.gmra.mxu0 %v1280
        %v2001 = vpop.f32.mrf.mxu0
        %v2002 = vadd.f32 %v441, %v2001
        %v2003 = vpop.f32.mrf.mxu0
        %v2004 = vpop.f32.mrf.mxu0
        %v2005 = vadd.f32 %v441, %v2004
        %v2006 = vpop.f32.mrf.mxu0
        %2007 = vmatprep.mubr.bf16.mxu0 0
        %2008 = vmatmul.mubr.bf16.gmra.mxu0 %v1283
        %v2009 = vpop.f32.mrf.mxu0
        %v2010 = vadd.f32 %v441, %v2009
        %v2011 = vpop.f32.mrf.mxu0
        %v2012 = vpop.f32.mrf.mxu0
        %v2013 = vadd.f32 %v441, %v2012
        %v2014 = vpop.f32.mrf.mxu0
        %2015 = vmatprep.mubr.bf16.mxu0 0
        %2016 = vmatmul.mubr.bf16.gmra.mxu0 %v1286
        %v2017 = vpop.f32.mrf.mxu0
        %v2018 = vadd.f32 %v441, %v2017
        %v2019 = vpop.f32.mrf.mxu0
        %v2020 = vpop.f32.mrf.mxu0
        %v2021 = vadd.f32 %v441, %v2020
        %v2022 = vpop.f32.mrf.mxu0
        %2023 = vmatprep.mubr.bf16.mxu0 0
        %2024 = vmatmul.mubr.bf16.gmra.mxu0 %v1289
        %v2025 = vpop.f32.mrf.mxu0
        %v2026 = vadd.f32 %v441, %v2025
        %v2027 = vpop.f32.mrf.mxu0
        %v2028 = vpop.f32.mrf.mxu0
        %v2029 = vadd.f32 %v441, %v2028
        %v2030 = vpop.f32.mrf.mxu0
        %2031 = vmatprep.mubr.bf16.mxu0 0
        %2032 = vmatmul.mubr.bf16.gmra.mxu0 %v1292
        %v2033 = vpop.f32.mrf.mxu0
        %v2034 = vadd.f32 %v441, %v2033
        %v2035 = vpop.f32.mrf.mxu0
        %v2036 = vpop.f32.mrf.mxu0
        %v2037 = vadd.f32 %v441, %v2036
        %v2038 = vpop.f32.mrf.mxu0
        %2039 = vmatprep.mubr.bf16.mxu0 0
        %2040 = vmatmul.mubr.bf16.gmra.mxu0 %v1295
        %v2041 = vpop.f32.mrf.mxu0
        %v2042 = vadd.f32 %v441, %v2041
        %v2043 = vpop.f32.mrf.mxu0
        %v2044 = vpop.f32.mrf.mxu0
        %v2045 = vadd.f32 %v441, %v2044
        %v2046 = vpop.f32.mrf.mxu0
        %2047 = vmatprep.mubr.bf16.mxu0 0
        %2048 = vmatmul.mubr.bf16.gmra.mxu0 %v1298
        %v2049 = vpop.f32.mrf.mxu0
        %v2050 = vadd.f32 %v441, %v2049
        %v2051 = vpop.f32.mrf.mxu0
        %v2052 = vpop.f32.mrf.mxu0
        %v2053 = vadd.f32 %v441, %v2052
        %v2054 = vpop.f32.mrf.mxu0
        %2055 = vmatprep.mubr.bf16.mxu0 0
        %2056 = vmatmul.mubr.bf16.gmra.mxu0 %v1301
        %v2057 = vpop.f32.mrf.mxu0
        %v2058 = vadd.f32 %v441, %v2057
        %v2059 = vpop.f32.mrf.mxu0
        %v2060 = vpop.f32.mrf.mxu0
        %v2061 = vadd.f32 %v441, %v2060
        %v2062 = vpop.f32.mrf.mxu0
        %2063 = vmatprep.mubr.bf16.mxu0 0
        %2064 = vmatmul.mubr.bf16.gmra.mxu0 %v1304
        %v2065 = vpop.f32.mrf.mxu0
        %v2066 = vadd.f32 %v441, %v2065
        %v2067 = vpop.f32.mrf.mxu0
        %v2068 = vpop.f32.mrf.mxu0
        %v2069 = vadd.f32 %v441, %v2068
        %v2070 = vpop.f32.mrf.mxu0
        %2071 = vmatprep.mubr.bf16.mxu0 0
        %2072 = vmatmul.mubr.bf16.gmra.mxu0 %v1307
        %v2073 = vpop.f32.mrf.mxu0
        %v2074 = vadd.f32 %v441, %v2073
        %v2075 = vpop.f32.mrf.mxu0
        %v2076 = vpop.f32.mrf.mxu0
        %v2077 = vadd.f32 %v441, %v2076
        %v2078 = vpop.f32.mrf.mxu0
        %2079 = vmatprep.mubr.bf16.mxu0 0
        %2080 = vmatmul.mubr.bf16.gmra.mxu0 %v1310
        %v2081 = vpop.f32.mrf.mxu0
        %v2082 = vadd.f32 %v441, %v2081
        %v2083 = vpop.f32.mrf.mxu0
        %v2084 = vpop.f32.mrf.mxu0
        %v2085 = vadd.f32 %v441, %v2084
        %v2086 = vpop.f32.mrf.mxu0
        %2087 = vmatprep.mubr.bf16.mxu0 0
        %2088 = vmatmul.mubr.bf16.gmra.mxu0 %v1313
        %v2089 = vpop.f32.mrf.mxu0
        %v2090 = vadd.f32 %v441, %v2089
        %v2091 = vpop.f32.mrf.mxu0
        %v2092 = vpop.f32.mrf.mxu0
        %v2093 = vadd.f32 %v441, %v2092
        %v2094 = vpop.f32.mrf.mxu0
        %2095 = vmatprep.mubr.bf16.mxu0 0
        %2096 = vmatmul.mubr.bf16.gmra.mxu0 %v1316
        %v2097 = vpop.f32.mrf.mxu0
        %v2098 = vadd.f32 %v441, %v2097
        %v2099 = vpop.f32.mrf.mxu0
        %v2100 = vpop.f32.mrf.mxu0
        %v2101 = vadd.f32 %v441, %v2100
        %v2102 = vpop.f32.mrf.mxu0
        %2103 = vmatprep.mubr.bf16.mxu0 0
        %2104 = vmatmul.mubr.bf16.gmra.mxu0 %v1319
        %v2105 = vpop.f32.mrf.mxu0
        %v2106 = vadd.f32 %v441, %v2105
        %v2107 = vpop.f32.mrf.mxu0
        %v2108 = vpop.f32.mrf.mxu0
        %v2109 = vadd.f32 %v441, %v2108
        %v2110 = vpop.f32.mrf.mxu0
        %2111 = vmatprep.mubr.bf16.mxu0 0
        %2112 = vmatmul.mubr.bf16.gmra.mxu0 %v1322
        %v2113 = vpop.f32.mrf.mxu0
        %v2114 = vadd.f32 %v441, %v2113
        %v2115 = vpop.f32.mrf.mxu0
        %v2116 = vpop.f32.mrf.mxu0
        %v2117 = vadd.f32 %v441, %v2116
        %v2118 = vpop.f32.mrf.mxu0
        %2119 = vmatprep.mubr.bf16.mxu0 0
        %2120 = vmatmul.mubr.bf16.gmra.mxu0 %v1325
        %v2121 = vpop.f32.mrf.mxu0
        %v2122 = vadd.f32 %v441, %v2121
        %v2123 = vpop.f32.mrf.mxu0
        %v2124 = vpop.f32.mrf.mxu0
        %v2125 = vadd.f32 %v441, %v2124
        %v2126 = vpop.f32.mrf.mxu0
        %2127 = vmatprep.mubr.bf16.mxu0 0
        %2128 = vmatmul.mubr.bf16.gmra.mxu0 %v1328
        %v2129 = vpop.f32.mrf.mxu0
        %v2130 = vadd.f32 %v441, %v2129
        %v2131 = vpop.f32.mrf.mxu0
        %v2132 = vpop.f32.mrf.mxu0
        %v2133 = vadd.f32 %v441, %v2132
        %v2134 = vpop.f32.mrf.mxu0
        %2135 = vmatprep.mubr.bf16.mxu0 0
        %2136 = vmatmul.mubr.bf16.gmra.mxu0 %v1331
        %v2137 = vpop.f32.mrf.mxu0
        %v2138 = vadd.f32 %v441, %v2137
        %v2139 = vpop.f32.mrf.mxu0
        %v2140 = vpop.f32.mrf.mxu0
        %v2141 = vadd.f32 %v441, %v2140
        %v2142 = vpop.f32.mrf.mxu0
        %2143 = vmatprep.mubr.bf16.mxu0 0
        %2144 = vmatmul.mubr.bf16.gmra.mxu0 %v1334
        %v2145 = vpop.f32.mrf.mxu0
        %v2146 = vadd.f32 %v441, %v2145
        %v2147 = vpop.f32.mrf.mxu0
        %v2148 = vpop.f32.mrf.mxu0
        %v2149 = vadd.f32 %v441, %v2148
        %v2150 = vpop.f32.mrf.mxu0
        %2151 = vmatprep.mubr.bf16.mxu0 0
        %2152 = vmatmul.mubr.bf16.gmra.mxu0 %v1337
        %v2153 = vpop.f32.mrf.mxu0
        %v2154 = vadd.f32 %v441, %v2153
        %v2155 = vpop.f32.mrf.mxu0
        %v2156 = vpop.f32.mrf.mxu0
        %v2157 = vadd.f32 %v441, %v2156
        %v2158 = vpop.f32.mrf.mxu0
        %2159 = vmatprep.mubr.bf16.mxu0 0
        %2160 = vmatmul.mubr.bf16.gmra.mxu0 %v1340
        %v2161 = vpop.f32.mrf.mxu0
        %v2162 = vadd.f32 %v441, %v2161
        %v2163 = vpop.f32.mrf.mxu0
        %v2164 = vpop.f32.mrf.mxu0
        %v2165 = vadd.f32 %v441, %v2164
        %v2166 = vpop.f32.mrf.mxu0
        %2167 = vmatprep.mubr.bf16.mxu0 0
        %2168 = vmatmul.mubr.bf16.gmra.mxu0 %v1343
        %v2169 = vpop.f32.mrf.mxu0
        %v2170 = vadd.f32 %v441, %v2169
        %v2171 = vpop.f32.mrf.mxu0
        %v2172 = vpop.f32.mrf.mxu0
        %v2173 = vadd.f32 %v441, %v2172
        %v2174 = vpop.f32.mrf.mxu0
        %2175 = vmatprep.mubr.bf16.mxu0 0
        %2176 = vmatmul.mubr.bf16.gmra.mxu0 %v1346
        %v2177 = vpop.f32.mrf.mxu0
        %v2178 = vadd.f32 %v441, %v2177
        %v2179 = vpop.f32.mrf.mxu0
        %v2180 = vpop.f32.mrf.mxu0
        %v2181 = vadd.f32 %v441, %v2180
        %v2182 = vpop.f32.mrf.mxu0
        %2183 = vmatprep.mubr.bf16.mxu0 0
        %2184 = vmatmul.mubr.bf16.gmra.mxu0 %v1349
        %v2185 = vpop.f32.mrf.mxu0
        %v2186 = vadd.f32 %v441, %v2185
        %v2187 = vpop.f32.mrf.mxu0
        %v2188 = vpop.f32.mrf.mxu0
        %v2189 = vadd.f32 %v441, %v2188
        %v2190 = vpop.f32.mrf.mxu0
        %2191 = vmatprep.mubr.bf16.mxu0 0
        %2192 = vmatmul.mubr.bf16.gmra.mxu0 %v1352
        %v2193 = vpop.f32.mrf.mxu0
        %v2194 = vadd.f32 %v441, %v2193
        %v2195 = vpop.f32.mrf.mxu0
        %v2196 = vpop.f32.mrf.mxu0
        %v2197 = vadd.f32 %v441, %v2196
        %v2198 = vpop.f32.mrf.mxu0
        %2199 = vmatprep.mubr.bf16.mxu0 0
        %2200 = vmatmul.mubr.bf16.gmra.mxu0 %v1355
        %v2201 = vpop.f32.mrf.mxu0
        %v2202 = vadd.f32 %v441, %v2201
        %v2203 = vpop.f32.mrf.mxu0
        %v2204 = vpop.f32.mrf.mxu0
        %v2205 = vadd.f32 %v441, %v2204
        %v2206 = vpop.f32.mrf.mxu0
        %2207 = vmatprep.mubr.bf16.mxu0 0
        %2208 = vmatmul.mubr.bf16.gmra.mxu0 %v1358
        %v2209 = vpop.f32.mrf.mxu0
        %v2210 = vadd.f32 %v441, %v2209
        %v2211 = vpop.f32.mrf.mxu0
        %v2212 = vpop.f32.mrf.mxu0
        %v2213 = vadd.f32 %v441, %v2212
        %v2214 = vpop.f32.mrf.mxu0
        %2215 = vmatprep.mubr.bf16.mxu0 0
        %2216 = vmatmul.mubr.bf16.gmra.mxu0 %v1361
        %v2217 = vpop.f32.mrf.mxu0
        %v2218 = vadd.f32 %v441, %v2217
        %v2219 = vpop.f32.mrf.mxu0
        %v2220 = vpop.f32.mrf.mxu0
        %v2221 = vadd.f32 %v441, %v2220
        %v2222 = vpop.f32.mrf.mxu0
        %2223 = vmatprep.mubr.bf16.mxu0 0
        %2224 = vmatmul.mubr.bf16.gmra.mxu0 %v1364
        %v2225 = vpop.f32.mrf.mxu0
        %v2226 = vadd.f32 %v441, %v2225
        %v2227 = vpop.f32.mrf.mxu0
        %v2228 = vpop.f32.mrf.mxu0
        %v2229 = vadd.f32 %v441, %v2228
        %v2230 = vpop.f32.mrf.mxu0
        %2231 = vmatprep.mubr.bf16.mxu0 0
        %2232 = vmatmul.mubr.bf16.gmra.mxu0 %v1367
        %v2233 = vpop.f32.mrf.mxu0
        %v2234 = vadd.f32 %v441, %v2233
        %v2235 = vpop.f32.mrf.mxu0
        %v2236 = vpop.f32.mrf.mxu0
        %v2237 = vadd.f32 %v441, %v2236
        %v2238 = vpop.f32.mrf.mxu0
        %2239 = vmatprep.mubr.bf16.mxu0 0
        %2240 = vmatmul.mubr.bf16.gmra.mxu0 %v1370
        %v2241 = vpop.f32.mrf.mxu0
        %v2242 = vadd.f32 %v441, %v2241
        %v2243 = vpop.f32.mrf.mxu0
        %v2244 = vpop.f32.mrf.mxu0
        %v2245 = vadd.f32 %v441, %v2244
        %v2246 = vpop.f32.mrf.mxu0
        %2247 = vmatprep.mubr.bf16.mxu0 0
        %2248 = vmatmul.mubr.bf16.gmra.mxu0 %v1373
        %v2249 = vpop.f32.mrf.mxu0
        %v2250 = vadd.f32 %v441, %v2249
        %v2251 = vpop.f32.mrf.mxu0
        %v2252 = vpop.f32.mrf.mxu0
        %v2253 = vadd.f32 %v441, %v2252
        %v2254 = vpop.f32.mrf.mxu0
        %2255 = vmatprep.mubr.bf16.mxu0 0
        %2256 = vmatmul.mubr.bf16.gmra.mxu0 %v1376
        %v2257 = vpop.f32.mrf.mxu0
        %v2258 = vadd.f32 %v441, %v2257
        %v2259 = vpop.f32.mrf.mxu0
        %v2260 = vpop.f32.mrf.mxu0
        %v2261 = vadd.f32 %v441, %v2260
        %v2262 = vpop.f32.mrf.mxu0
        %2263 = vmatprep.mubr.bf16.mxu0 0
        %2264 = vmatmul.mubr.bf16.gmra.mxu0 %v1379
        %v2265 = vpop.f32.mrf.mxu0
        %v2266 = vadd.f32 %v441, %v2265
        %v2267 = vpop.f32.mrf.mxu0
        %v2268 = vpop.f32.mrf.mxu0
        %v2269 = vadd.f32 %v441, %v2268
        %v2270 = vpop.f32.mrf.mxu0
        %2271 = vmatprep.mubr.bf16.mxu0 0
        %2272 = vmatmul.mubr.bf16.gmra.mxu0 %v1382
        %v2273 = vpop.f32.mrf.mxu0
        %v2274 = vadd.f32 %v441, %v2273
        %v2275 = vpop.f32.mrf.mxu0
        %v2276 = vpop.f32.mrf.mxu0
        %v2277 = vadd.f32 %v441, %v2276
        %v2278 = vpop.f32.mrf.mxu0
        %2279 = vmatprep.mubr.bf16.mxu0 0
        %2280 = vmatmul.mubr.bf16.gmra.mxu0 %v1385
        %v2281 = vpop.f32.mrf.mxu0
        %v2282 = vadd.f32 %v441, %v2281
        %v2283 = vpop.f32.mrf.mxu0
        %v2284 = vpop.f32.mrf.mxu0
        %v2285 = vadd.f32 %v441, %v2284
        %v2286 = vpop.f32.mrf.mxu0
        %2287 = vmatprep.mubr.bf16.mxu0 0
        %2288 = vmatmul.mubr.bf16.gmra.mxu0 %v1388
        %v2289 = vpop.f32.mrf.mxu0
        %v2290 = vadd.f32 %v441, %v2289
        %v2291 = vpop.f32.mrf.mxu0
        %v2292 = vpop.f32.mrf.mxu0
        %v2293 = vadd.f32 %v441, %v2292
        %v2294 = vpop.f32.mrf.mxu0
        %2295 = vmatprep.mubr.bf16.mxu0 0
        %2296 = vmatmul.mubr.bf16.gmra.mxu0 %v1391
        %v2297 = vpop.f32.mrf.mxu0
        %v2298 = vadd.f32 %v441, %v2297
        %v2299 = vpop.f32.mrf.mxu0
        %v2300 = vpop.f32.mrf.mxu0
        %v2301 = vadd.f32 %v441, %v2300
        %v2302 = vpop.f32.mrf.mxu0
        %2303 = vmatprep.mubr.bf16.mxu0 0
        %2304 = vmatmul.mubr.bf16.gmra.mxu0 %v1394
        %v2305 = vpop.f32.mrf.mxu0
        %v2306 = vadd.f32 %v441, %v2305
        %v2307 = vpop.f32.mrf.mxu0
        %v2308 = vpop.f32.mrf.mxu0
        %v2309 = vadd.f32 %v441, %v2308
        %v2310 = vpop.f32.mrf.mxu0
        %2311 = vmatprep.mubr.bf16.mxu0 0
        %2312 = vmatmul.mubr.bf16.gmra.mxu0 %v1397
        %v2313 = vpop.f32.mrf.mxu0
        %v2314 = vadd.f32 %v441, %v2313
        %v2315 = vpop.f32.mrf.mxu0
        %v2316 = vpop.f32.mrf.mxu0
        %v2317 = vadd.f32 %v441, %v2316
        %v2318 = vpop.f32.mrf.mxu0
        %2319 = vmatprep.mubr.bf16.mxu0 0
        %2320 = vmatmul.mubr.bf16.gmra.mxu0 %v1400
        %v2321 = vpop.f32.mrf.mxu0
        %v2322 = vadd.f32 %v441, %v2321
        %v2323 = vpop.f32.mrf.mxu0
        %v2324 = vpop.f32.mrf.mxu0
        %v2325 = vadd.f32 %v441, %v2324
        %v2326 = vpop.f32.mrf.mxu0
        %2327 = vmatprep.mubr.bf16.mxu0 0
        %2328 = vmatmul.mubr.bf16.gmra.mxu0 %v1403
        %v2329 = vpop.f32.mrf.mxu0
        %v2330 = vadd.f32 %v441, %v2329
        %v2331 = vpop.f32.mrf.mxu0
        %v2332 = vpop.f32.mrf.mxu0
        %v2333 = vadd.f32 %v441, %v2332
        %v2334 = vpop.f32.mrf.mxu0
        %2335 = vmatprep.mubr.bf16.mxu0 0
        %2336 = vmatmul.mubr.bf16.gmra.mxu0 %v1406
        %v2337 = vpop.f32.mrf.mxu0
        %v2338 = vadd.f32 %v441, %v2337
        %v2339 = vpop.f32.mrf.mxu0
        %v2340 = vpop.f32.mrf.mxu0
        %v2341 = vadd.f32 %v441, %v2340
        %v2342 = vpop.f32.mrf.mxu0
        %2343 = vmatprep.mubr.bf16.mxu0 0
        %2344 = vmatmul.mubr.bf16.gmra.mxu0 %v1409
        %v2345 = vpop.f32.mrf.mxu0
        %v2346 = vadd.f32 %v441, %v2345
        %v2347 = vpop.f32.mrf.mxu0
        %v2348 = vpop.f32.mrf.mxu0
        %v2349 = vadd.f32 %v441, %v2348
        %v2350 = vpop.f32.mrf.mxu0
        %2351 = vmatprep.mubr.bf16.mxu0 0
        %2352 = vmatmul.mubr.bf16.gmra.mxu0 %v1412
        %v2353 = vpop.f32.mrf.mxu0
        %v2354 = vadd.f32 %v441, %v2353
        %v2355 = vpop.f32.mrf.mxu0
        %v2356 = vpop.f32.mrf.mxu0
        %v2357 = vadd.f32 %v441, %v2356
        %v2358 = vpop.f32.mrf.mxu0
        %2359 = vmatprep.mubr.bf16.mxu0 0
        %2360 = vmatmul.mubr.bf16.gmra.mxu0 %v1415
        %v2361 = vpop.f32.mrf.mxu0
        %v2362 = vadd.f32 %v441, %v2361
        %v2363 = vpop.f32.mrf.mxu0
        %v2364 = vpop.f32.mrf.mxu0
        %v2365 = vadd.f32 %v441, %v2364
        %v2366 = vpop.f32.mrf.mxu0
        %2367 = vmatprep.mubr.bf16.mxu0 0
        %2368 = vmatmul.mubr.bf16.gmra.mxu0 %v1418
        %v2369 = vpop.f32.mrf.mxu0
        %v2370 = vadd.f32 %v441, %v2369
        %v2371 = vpop.f32.mrf.mxu0
        %v2372 = vpop.f32.mrf.mxu0
        %v2373 = vadd.f32 %v441, %v2372
        %v2374 = vpop.f32.mrf.mxu0
        %2375 = vmatprep.mubr.bf16.mxu0 0
        %2376 = vmatmul.mubr.bf16.gmra.mxu0 %v1421
        %v2377 = vpop.f32.mrf.mxu0
        %v2378 = vadd.f32 %v441, %v2377
        %v2379 = vpop.f32.mrf.mxu0
        %v2380 = vpop.f32.mrf.mxu0
        %v2381 = vadd.f32 %v441, %v2380
        %v2382 = vpop.f32.mrf.mxu0
        %2383 = vmatprep.mubr.bf16.mxu0 0
        %2384 = vmatmul.mubr.bf16.gmra.mxu0 %v1424
        %v2385 = vpop.f32.mrf.mxu0
        %v2386 = vadd.f32 %v441, %v2385
        %v2387 = vpop.f32.mrf.mxu0
        %v2388 = vpop.f32.mrf.mxu0
        %v2389 = vadd.f32 %v441, %v2388
        %v2390 = vpop.f32.mrf.mxu0
        %2391 = vmatprep.mubr.bf16.mxu0 0
        %2392 = vmatmul.mubr.bf16.gmra.mxu0 %v1427
        %v2393 = vpop.f32.mrf.mxu0
        %v2394 = vadd.f32 %v441, %v2393
        %v2395 = vpop.f32.mrf.mxu0
        %v2396 = vpop.f32.mrf.mxu0
        %v2397 = vadd.f32 %v441, %v2396
        %v2398 = vpop.f32.mrf.mxu0
        %2399 = vmatprep.mubr.bf16.mxu0 0
        %2400 = vmatmul.mubr.bf16.gmra.mxu0 %v1430
        %v2401 = vpop.f32.mrf.mxu0
        %v2402 = vadd.f32 %v441, %v2401
        %v2403 = vpop.f32.mrf.mxu0
        %v2404 = vpop.f32.mrf.mxu0
        %v2405 = vadd.f32 %v441, %v2404
        %v2406 = vpop.f32.mrf.mxu0
        %2407 = vmatprep.mubr.bf16.mxu0 0
        %2408 = vmatmul.mubr.bf16.gmra.mxu0 %v1433
        %v2409 = vpop.f32.mrf.mxu0
        %v2410 = vadd.f32 %v441, %v2409
        %v2411 = vpop.f32.mrf.mxu0
        %v2412 = vpop.f32.mrf.mxu0
        %v2413 = vadd.f32 %v441, %v2412
        %v2414 = vpop.f32.mrf.mxu0
        %2415 = vmatprep.mubr.bf16.mxu0 0
        %2416 = vmatmul.mubr.bf16.gmra.mxu0 %v1436
        %v2417 = vpop.f32.mrf.mxu0
        %v2418 = vadd.f32 %v441, %v2417
        %v2419 = vpop.f32.mrf.mxu0
        %v2420 = vpop.f32.mrf.mxu0
        %v2421 = vadd.f32 %v441, %v2420
        %v2422 = vpop.f32.mrf.mxu0
        %2423 = vmatprep.mubr.bf16.mxu0 0
        %2424 = vmatmul.mubr.bf16.gmra.mxu0 %v1439
        %v2425 = vpop.f32.mrf.mxu0
        %v2426 = vadd.f32 %v441, %v2425
        %v2427 = vpop.f32.mrf.mxu0
        %v2428 = vpop.f32.mrf.mxu0
        %v2429 = vadd.f32 %v441, %v2428
        %v2430 = vpop.f32.mrf.mxu0
        %2431 = vmatprep.mubr.bf16.mxu0 0
        %2432 = vmatmul.mubr.bf16.gmra.mxu0 %v1442
        %v2433 = vpop.f32.mrf.mxu0
        %v2434 = vadd.f32 %v441, %v2433
        %v2435 = vpop.f32.mrf.mxu0
        %v2436 = vpop.f32.mrf.mxu0
        %v2437 = vadd.f32 %v441, %v2436
        %v2438 = vpop.f32.mrf.mxu0
        %2439 = vmatprep.mubr.bf16.mxu0 0
        %2440 = vmatmul.mubr.bf16.gmra.mxu0 %v1445
        %v2441 = vpop.f32.mrf.mxu0
        %v2442 = vadd.f32 %v441, %v2441
        %v2443 = vpop.f32.mrf.mxu0
        %v2444 = vpop.f32.mrf.mxu0
        %v2445 = vadd.f32 %v441, %v2444
        %v2446 = vpop.f32.mrf.mxu0
        %2447 = vmatprep.mubr.bf16.mxu0 0
        %2448 = vmatmul.mubr.bf16.gmra.mxu0 %v1448
        %v2449 = vpop.f32.mrf.mxu0
        %v2450 = vadd.f32 %v441, %v2449
        %v2451 = vpop.f32.mrf.mxu0
        %v2452 = vpop.f32.mrf.mxu0
        %v2453 = vadd.f32 %v441, %v2452
        %v2454 = vpop.f32.mrf.mxu0
        %2455 = vmatprep.mubr.bf16.mxu0 0
        %2456 = vmatmul.mubr.bf16.gmra.mxu0 %v1451
        %v2457 = vpop.f32.mrf.mxu0
        %v2458 = vadd.f32 %v441, %v2457
        %v2459 = vpop.f32.mrf.mxu0
        %v2460 = vpop.f32.mrf.mxu0
        %v2461 = vadd.f32 %v441, %v2460
        %v2462 = vpop.f32.mrf.mxu0
        %2463 = vmatprep.mubr.bf16.mxu0 0
        %2464 = vmatmul.mubr.bf16.gmra.mxu0 %v1454
        %v2465 = vpop.f32.mrf.mxu0
        %v2466 = vadd.f32 %v441, %v2465
        %v2467 = vpop.f32.mrf.mxu0
        %v2468 = vpop.f32.mrf.mxu0
        %v2469 = vadd.f32 %v441, %v2468
        %v2470 = vpop.f32.mrf.mxu0
        %2471 = vmatprep.mubr.bf16.mxu0 0
        %2472 = vmatmul.mubr.bf16.gmra.mxu0 %v1457
        %v2473 = vpop.f32.mrf.mxu0
        %v2474 = vadd.f32 %v441, %v2473
        %v2475 = vpop.f32.mrf.mxu0
        %v2476 = vpop.f32.mrf.mxu0
        %v2477 = vadd.f32 %v441, %v2476
        %v2478 = vpop.f32.mrf.mxu0
        %2479 = vmatprep.mubr.bf16.mxu0 0
        %2480 = vmatmul.mubr.bf16.gmra.mxu0 %v1460
        %v2481 = vpop.f32.mrf.mxu0
        %v2482 = vadd.f32 %v441, %v2481
        %v2483 = vpop.f32.mrf.mxu0
        %v2484 = vpop.f32.mrf.mxu0
        %v2485 = vadd.f32 %v441, %v2484
        %v2486 = vpop.f32.mrf.mxu0
        %2487 = vmatprep.mubr.bf16.mxu0 0
        %2488 = vmatmul.mubr.bf16.gmra.mxu0 %v1463
        %v2489 = vpop.f32.mrf.mxu0
        %v2490 = vadd.f32 %v441, %v2489
        %v2491 = vpop.f32.mrf.mxu0
        %v2492 = vpop.f32.mrf.mxu0
        %v2493 = vadd.f32 %v441, %v2492
        %v2494 = vpop.f32.mrf.mxu0
        %2495 = vmatprep.mubr.bf16.mxu0 0
        %2496 = vmatmul.mubr.bf16.gmra.mxu0 %v1466
        %v2497 = vpop.f32.mrf.mxu0
        %v2498 = vadd.f32 %v441, %v2497
        %v2499 = vpop.f32.mrf.mxu0
        %v2500 = vpop.f32.mrf.mxu0
        %v2501 = vadd.f32 %v441, %v2500
        %v2502 = vpop.f32.mrf.mxu0
        %2503 = vmatprep.mubr.bf16.mxu0 0
        %2504 = vmatmul.mubr.bf16.gmra.mxu0 %v1469
        %v2505 = vpop.f32.mrf.mxu0
        %v2506 = vadd.f32 %v441, %v2505
        %v2507 = vpop.f32.mrf.mxu0
        %v2508 = vpop.f32.mrf.mxu0
        %v2509 = vadd.f32 %v441, %v2508
        %v2510 = vpop.f32.mrf.mxu0
        %2511 = vmatprep.mubr.bf16.mxu0 0
        %2512 = vmatmul.mubr.bf16.gmra.mxu0 %v1472
        %v2513 = vpop.f32.mrf.mxu0
        %v2514 = vadd.f32 %v441, %v2513
        %v2515 = vpop.f32.mrf.mxu0
        %v2516 = vpop.f32.mrf.mxu0
        %v2517 = vadd.f32 %v441, %v2516
        %v2518 = vpop.f32.mrf.mxu0
        %2519 = vmatprep.mubr.bf16.mxu0 0
        %2520 = vmatmul.mubr.bf16.gmra.mxu0 %v1475
        %v2521 = vpop.f32.mrf.mxu0
        %v2522 = vadd.f32 %v441, %v2521
        %v2523 = vpop.f32.mrf.mxu0
        %v2524 = vpop.f32.mrf.mxu0
        %v2525 = vadd.f32 %v441, %v2524
        %v2526 = vpop.f32.mrf.mxu0
        %2527 = vmatprep.mubr.bf16.mxu0 0
        %2528 = vmatmul.mubr.bf16.gmra.mxu0 %v1478
        %v2529 = vpop.f32.mrf.mxu0
        %v2530 = vadd.f32 %v441, %v2529
        %v2531 = vpop.f32.mrf.mxu0
        %v2532 = vpop.f32.mrf.mxu0
        %v2533 = vadd.f32 %v441, %v2532
        %v2534 = vpop.f32.mrf.mxu0
        %2535 = vmatprep.mubr.bf16.mxu0 0
        %2536 = vmatmul.mubr.bf16.gmra.mxu0 %v1481
        %v2537 = vpop.f32.mrf.mxu0
        %v2538 = vadd.f32 %v441, %v2537
        %v2539 = vpop.f32.mrf.mxu0
        %v2540 = vpop.f32.mrf.mxu0
        %v2541 = vadd.f32 %v441, %v2540
        %v2542 = vpop.f32.mrf.mxu0
        %2543 = vdwg.mxu0
        %v2544 = vmax.f32 %v1522, 0.0
        %v2545 = vmax.f32 %v1525, 0.0
        %v2546 = vmax.f32 %v1530, 0.0
        %v2547 = vmax.f32 %v1533, 0.0
        %v2548 = vmax.f32 %v1538, 0.0
        %v2549 = vmax.f32 %v1541, 0.0
        %v2550 = vmax.f32 %v1546, 0.0
        %v2551 = vmax.f32 %v1549, 0.0
        %v2552 = vmax.f32 %v1554, 0.0
        %v2553 = vmax.f32 %v1557, 0.0
        %v2554 = vmax.f32 %v1562, 0.0
        %v2555 = vmax.f32 %v1565, 0.0
        %v2556 = vmax.f32 %v1570, 0.0
        %v2557 = vmax.f32 %v1573, 0.0
        %v2558 = vmax.f32 %v1578, 0.0
        %v2559 = vmax.f32 %v1581, 0.0
        %v2560 = vmax.f32 %v1586, 0.0
        %v2561 = vmax.f32 %v1589, 0.0
        %v2562 = vmax.f32 %v1594, 0.0
        %v2563 = vmax.f32 %v1597, 0.0
        %v2564 = vmax.f32 %v1602, 0.0
        %v2565 = vmax.f32 %v1605, 0.0
        %v2566 = vmax.f32 %v1610, 0.0
        %v2567 = vmax.f32 %v1613, 0.0
        %v2568 = vmax.f32 %v1618, 0.0
        %v2569 = vmax.f32 %v1621, 0.0
        %v2570 = vmax.f32 %v1626, 0.0
        %v2571 = vmax.f32 %v1629, 0.0
        %v2572 = vmax.f32 %v1634, 0.0
        %v2573 = vmax.f32 %v1637, 0.0
        %v2574 = vmax.f32 %v1642, 0.0
        %v2575 = vmax.f32 %v1645, 0.0
        %v2576 = vmax.f32 %v1650, 0.0
        %v2577 = vmax.f32 %v1653, 0.0
        %v2578 = vmax.f32 %v1658, 0.0
        %v2579 = vmax.f32 %v1661, 0.0
        %v2580 = vmax.f32 %v1666, 0.0
        %v2581 = vmax.f32 %v1669, 0.0
        %v2582 = vmax.f32 %v1674, 0.0
        %v2583 = vmax.f32 %v1677, 0.0
        %v2584 = vmax.f32 %v1682, 0.0
        %v2585 = vmax.f32 %v1685, 0.0
        %v2586 = vmax.f32 %v1690, 0.0
        %v2587 = vmax.f32 %v1693, 0.0
        %v2588 = vmax.f32 %v1698, 0.0
        %v2589 = vmax.f32 %v1701, 0.0
        %v2590 = vmax.f32 %v1706, 0.0
        %v2591 = vmax.f32 %v1709, 0.0
        %v2592 = vmax.f32 %v1714, 0.0
        %v2593 = vmax.f32 %v1717, 0.0
        %v2594 = vmax.f32 %v1722, 0.0
        %v2595 = vmax.f32 %v1725, 0.0
        %v2596 = vmax.f32 %v1730, 0.0
        %v2597 = vmax.f32 %v1733, 0.0
        %v2598 = vmax.f32 %v1738, 0.0
        %v2599 = vmax.f32 %v1741, 0.0
        %v2600 = vmax.f32 %v1746, 0.0
        %v2601 = vmax.f32 %v1749, 0.0
        %v2602 = vmax.f32 %v1754, 0.0
        %v2603 = vmax.f32 %v1757, 0.0
        %v2604 = vmax.f32 %v1762, 0.0
        %v2605 = vmax.f32 %v1765, 0.0
        %v2606 = vmax.f32 %v1770, 0.0
        %v2607 = vmax.f32 %v1773, 0.0
        %v2608 = vmax.f32 %v1778, 0.0
        %v2609 = vmax.f32 %v1781, 0.0
        %v2610 = vmax.f32 %v1786, 0.0
        %v2611 = vmax.f32 %v1789, 0.0
        %v2612 = vmax.f32 %v1794, 0.0
        %v2613 = vmax.f32 %v1797, 0.0
        %v2614 = vmax.f32 %v1802, 0.0
        %v2615 = vmax.f32 %v1805, 0.0
        %v2616 = vmax.f32 %v1810, 0.0
        %v2617 = vmax.f32 %v1813, 0.0
        %v2618 = vmax.f32 %v1818, 0.0
        %v2619 = vmax.f32 %v1821, 0.0
        %v2620 = vmax.f32 %v1826, 0.0
        %v2621 = vmax.f32 %v1829, 0.0
        %v2622 = vmax.f32 %v1834, 0.0
        %v2623 = vmax.f32 %v1837, 0.0
        %v2624 = vmax.f32 %v1842, 0.0
        %v2625 = vmax.f32 %v1845, 0.0
        %v2626 = vmax.f32 %v1850, 0.0
        %v2627 = vmax.f32 %v1853, 0.0
        %v2628 = vmax.f32 %v1858, 0.0
        %v2629 = vmax.f32 %v1861, 0.0
        %v2630 = vmax.f32 %v1866, 0.0
        %v2631 = vmax.f32 %v1869, 0.0
        %v2632 = vmax.f32 %v1874, 0.0
        %v2633 = vmax.f32 %v1877, 0.0
        %v2634 = vmax.f32 %v1882, 0.0
        %v2635 = vmax.f32 %v1885, 0.0
        %v2636 = vmax.f32 %v1890, 0.0
        %v2637 = vmax.f32 %v1893, 0.0
        %v2638 = vmax.f32 %v1898, 0.0
        %v2639 = vmax.f32 %v1901, 0.0
        %v2640 = vmax.f32 %v1906, 0.0
        %v2641 = vmax.f32 %v1909, 0.0
        %v2642 = vmax.f32 %v1914, 0.0
        %v2643 = vmax.f32 %v1917, 0.0
        %v2644 = vmax.f32 %v1922, 0.0
        %v2645 = vmax.f32 %v1925, 0.0
        %v2646 = vmax.f32 %v1930, 0.0
        %v2647 = vmax.f32 %v1933, 0.0
        %v2648 = vmax.f32 %v1938, 0.0
        %v2649 = vmax.f32 %v1941, 0.0
        %v2650 = vmax.f32 %v1946, 0.0
        %v2651 = vmax.f32 %v1949, 0.0
        %v2652 = vmax.f32 %v1954, 0.0
        %v2653 = vmax.f32 %v1957, 0.0
        %v2654 = vmax.f32 %v1962, 0.0
        %v2655 = vmax.f32 %v1965, 0.0
        %v2656 = vmax.f32 %v1970, 0.0
        %v2657 = vmax.f32 %v1973, 0.0
        %v2658 = vmax.f32 %v1978, 0.0
        %v2659 = vmax.f32 %v1981, 0.0
        %v2660 = vmax.f32 %v1986, 0.0
        %v2661 = vmax.f32 %v1989, 0.0
        %v2662 = vmax.f32 %v1994, 0.0
        %v2663 = vmax.f32 %v1997, 0.0
        %v2664 = vmax.f32 %v2002, 0.0
        %v2665 = vmax.f32 %v2005, 0.0
        %v2666 = vmax.f32 %v2010, 0.0
        %v2667 = vmax.f32 %v2013, 0.0
        %v2668 = vmax.f32 %v2018, 0.0
        %v2669 = vmax.f32 %v2021, 0.0
        %v2670 = vmax.f32 %v2026, 0.0
        %v2671 = vmax.f32 %v2029, 0.0
        %v2672 = vmax.f32 %v2034, 0.0
        %v2673 = vmax.f32 %v2037, 0.0
        %v2674 = vmax.f32 %v2042, 0.0
        %v2675 = vmax.f32 %v2045, 0.0
        %v2676 = vmax.f32 %v2050, 0.0
        %v2677 = vmax.f32 %v2053, 0.0
        %v2678 = vmax.f32 %v2058, 0.0
        %v2679 = vmax.f32 %v2061, 0.0
        %v2680 = vmax.f32 %v2066, 0.0
        %v2681 = vmax.f32 %v2069, 0.0
        %v2682 = vmax.f32 %v2074, 0.0
        %v2683 = vmax.f32 %v2077, 0.0
        %v2684 = vmax.f32 %v2082, 0.0
        %v2685 = vmax.f32 %v2085, 0.0
        %v2686 = vmax.f32 %v2090, 0.0
        %v2687 = vmax.f32 %v2093, 0.0
        %v2688 = vmax.f32 %v2098, 0.0
        %v2689 = vmax.f32 %v2101, 0.0
        %v2690 = vmax.f32 %v2106, 0.0
        %v2691 = vmax.f32 %v2109, 0.0
        %v2692 = vmax.f32 %v2114, 0.0
        %v2693 = vmax.f32 %v2117, 0.0
        %v2694 = vmax.f32 %v2122, 0.0
        %v2695 = vmax.f32 %v2125, 0.0
        %v2696 = vmax.f32 %v2130, 0.0
        %v2697 = vmax.f32 %v2133, 0.0
        %v2698 = vmax.f32 %v2138, 0.0
        %v2699 = vmax.f32 %v2141, 0.0
        %v2700 = vmax.f32 %v2146, 0.0
        %v2701 = vmax.f32 %v2149, 0.0
        %v2702 = vmax.f32 %v2154, 0.0
        %v2703 = vmax.f32 %v2157, 0.0
        %v2704 = vmax.f32 %v2162, 0.0
        %v2705 = vmax.f32 %v2165, 0.0
        %v2706 = vmax.f32 %v2170, 0.0
        %v2707 = vmax.f32 %v2173, 0.0
        %v2708 = vmax.f32 %v2178, 0.0
        %v2709 = vmax.f32 %v2181, 0.0
        %v2710 = vmax.f32 %v2186, 0.0
        %v2711 = vmax.f32 %v2189, 0.0
        %v2712 = vmax.f32 %v2194, 0.0
        %v2713 = vmax.f32 %v2197, 0.0
        %v2714 = vmax.f32 %v2202, 0.0
        %v2715 = vmax.f32 %v2205, 0.0
        %v2716 = vmax.f32 %v2210, 0.0
        %v2717 = vmax.f32 %v2213, 0.0
        %v2718 = vmax.f32 %v2218, 0.0
        %v2719 = vmax.f32 %v2221, 0.0
        %v2720 = vmax.f32 %v2226, 0.0
        %v2721 = vmax.f32 %v2229, 0.0
        %v2722 = vmax.f32 %v2234, 0.0
        %v2723 = vmax.f32 %v2237, 0.0
        %v2724 = vmax.f32 %v2242, 0.0
        %v2725 = vmax.f32 %v2245, 0.0
        %v2726 = vmax.f32 %v2250, 0.0
        %v2727 = vmax.f32 %v2253, 0.0
        %v2728 = vmax.f32 %v2258, 0.0
        %v2729 = vmax.f32 %v2261, 0.0
        %v2730 = vmax.f32 %v2266, 0.0
        %v2731 = vmax.f32 %v2269, 0.0
        %v2732 = vmax.f32 %v2274, 0.0
        %v2733 = vmax.f32 %v2277, 0.0
        %v2734 = vmax.f32 %v2282, 0.0
        %v2735 = vmax.f32 %v2285, 0.0
        %v2736 = vmax.f32 %v2290, 0.0
        %v2737 = vmax.f32 %v2293, 0.0
        %v2738 = vmax.f32 %v2298, 0.0
        %v2739 = vmax.f32 %v2301, 0.0
        %v2740 = vmax.f32 %v2306, 0.0
        %v2741 = vmax.f32 %v2309, 0.0
        %v2742 = vmax.f32 %v2314, 0.0
        %v2743 = vmax.f32 %v2317, 0.0
        %v2744 = vmax.f32 %v2322, 0.0
        %v2745 = vmax.f32 %v2325, 0.0
        %v2746 = vmax.f32 %v2330, 0.0
        %v2747 = vmax.f32 %v2333, 0.0
        %v2748 = vmax.f32 %v2338, 0.0
        %v2749 = vmax.f32 %v2341, 0.0
        %v2750 = vmax.f32 %v2346, 0.0
        %v2751 = vmax.f32 %v2349, 0.0
        %v2752 = vmax.f32 %v2354, 0.0
        %v2753 = vmax.f32 %v2357, 0.0
        %v2754 = vmax.f32 %v2362, 0.0
        %v2755 = vmax.f32 %v2365, 0.0
        %v2756 = vmax.f32 %v2370, 0.0
        %v2757 = vmax.f32 %v2373, 0.0
        %v2758 = vmax.f32 %v2378, 0.0
        %v2759 = vmax.f32 %v2381, 0.0
        %v2760 = vmax.f32 %v2386, 0.0
        %v2761 = vmax.f32 %v2389, 0.0
        %v2762 = vmax.f32 %v2394, 0.0
        %v2763 = vmax.f32 %v2397, 0.0
        %v2764 = vmax.f32 %v2402, 0.0
        %v2765 = vmax.f32 %v2405, 0.0
        %v2766 = vmax.f32 %v2410, 0.0
        %v2767 = vmax.f32 %v2413, 0.0
        %v2768 = vmax.f32 %v2418, 0.0
        %v2769 = vmax.f32 %v2421, 0.0
        %v2770 = vmax.f32 %v2426, 0.0
        %v2771 = vmax.f32 %v2429, 0.0
        %v2772 = vmax.f32 %v2434, 0.0
        %v2773 = vmax.f32 %v2437, 0.0
        %v2774 = vmax.f32 %v2442, 0.0
        %v2775 = vmax.f32 %v2445, 0.0
        %v2776 = vmax.f32 %v2450, 0.0
        %v2777 = vmax.f32 %v2453, 0.0
        %v2778 = vmax.f32 %v2458, 0.0
        %v2779 = vmax.f32 %v2461, 0.0
        %v2780 = vmax.f32 %v2466, 0.0
        %v2781 = vmax.f32 %v2469, 0.0
        %v2782 = vmax.f32 %v2474, 0.0
        %v2783 = vmax.f32 %v2477, 0.0
        %v2784 = vmax.f32 %v2482, 0.0
        %v2785 = vmax.f32 %v2485, 0.0
        %v2786 = vmax.f32 %v2490, 0.0
        %v2787 = vmax.f32 %v2493, 0.0
        %v2788 = vmax.f32 %v2498, 0.0
        %v2789 = vmax.f32 %v2501, 0.0
        %v2790 = vmax.f32 %v2506, 0.0
        %v2791 = vmax.f32 %v2509, 0.0
        %v2792 = vmax.f32 %v2514, 0.0
        %v2793 = vmax.f32 %v2517, 0.0
        %v2794 = vmax.f32 %v2522, 0.0
        %v2795 = vmax.f32 %v2525, 0.0
        %v2796 = vmax.f32 %v2530, 0.0
        %v2797 = vmax.f32 %v2533, 0.0
        %v2798 = vmax.f32 %v2538, 0.0
        %v2799 = vmax.f32 %v2541, 0.0
        %vm2800 = vcmask 261120
        %v2801 = vsel %vm2800, %v2544, 0.0
        %v2802 = vsel %vm2800, %v2545, 0.0
        %v2803 = vadd.f32 %v2801, %v2802
        %v2804 = vsel %vm2800, %v2546, 0.0
        %v2805 = vadd.f32 %v2803, %v2804
        %v2806 = vsel %vm2800, %v2547, 0.0
        %v2807 = vadd.f32 %v2805, %v2806
        %v2808 = vsel %vm2800, %v2548, 0.0
        %v2809 = vadd.f32 %v2807, %v2808
        %v2810 = vsel %vm2800, %v2549, 0.0
        %v2811 = vadd.f32 %v2809, %v2810
        %v2812 = vsel %vm2800, %v2550, 0.0
        %v2813 = vadd.f32 %v2811, %v2812
        %v2814 = vsel %vm2800, %v2551, 0.0
        %v2815 = vadd.f32 %v2813, %v2814
        %v2816 = vsel %vm2800, %v2552, 0.0
        %v2817 = vadd.f32 %v2815, %v2816
        %v2818 = vsel %vm2800, %v2553, 0.0
        %v2819 = vadd.f32 %v2817, %v2818
        %v2820 = vsel %vm2800, %v2554, 0.0
        %v2821 = vadd.f32 %v2819, %v2820
        %v2822 = vsel %vm2800, %v2555, 0.0
        %v2823 = vadd.f32 %v2821, %v2822
        %v2824 = vsel %vm2800, %v2556, 0.0
        %v2825 = vadd.f32 %v2823, %v2824
        %v2826 = vsel %vm2800, %v2557, 0.0
        %v2827 = vadd.f32 %v2825, %v2826
        %v2828 = vsel %vm2800, %v2558, 0.0
        %v2829 = vadd.f32 %v2827, %v2828
        %v2830 = vsel %vm2800, %v2559, 0.0
        %v2831 = vadd.f32 %v2829, %v2830
        %v2832 = vsel %vm2800, %v2560, 0.0
        %v2833 = vadd.f32 %v2831, %v2832
        %v2834 = vsel %vm2800, %v2561, 0.0
        %v2835 = vadd.f32 %v2833, %v2834
        %v2836 = vsel %vm2800, %v2562, 0.0
        %v2837 = vadd.f32 %v2835, %v2836
        %v2838 = vsel %vm2800, %v2563, 0.0
        %v2839 = vadd.f32 %v2837, %v2838
        %v2840 = vsel %vm2800, %v2564, 0.0
        %v2841 = vadd.f32 %v2839, %v2840
        %v2842 = vsel %vm2800, %v2565, 0.0
        %v2843 = vadd.f32 %v2841, %v2842
        %v2844 = vsel %vm2800, %v2566, 0.0
        %v2845 = vadd.f32 %v2843, %v2844
        %v2846 = vsel %vm2800, %v2567, 0.0
        %v2847 = vadd.f32 %v2845, %v2846
        %v2848 = vsel %vm2800, %v2568, 0.0
        %v2849 = vadd.f32 %v2847, %v2848
        %v2850 = vsel %vm2800, %v2569, 0.0
        %v2851 = vadd.f32 %v2849, %v2850
        %v2852 = vsel %vm2800, %v2570, 0.0
        %v2853 = vadd.f32 %v2851, %v2852
        %v2854 = vsel %vm2800, %v2571, 0.0
        %v2855 = vadd.f32 %v2853, %v2854
        %v2856 = vsel %vm2800, %v2572, 0.0
        %v2857 = vadd.f32 %v2855, %v2856
        %v2858 = vsel %vm2800, %v2573, 0.0
        %v2859 = vadd.f32 %v2857, %v2858
        %v2860 = vsel %vm2800, %v2574, 0.0
        %v2861 = vadd.f32 %v2859, %v2860
        %v2862 = vsel %vm2800, %v2575, 0.0
        %v2863 = vadd.f32 %v2861, %v2862
        %v2864 = vrot.slane %v2863, 4
        %v2865 = vadd.f32 %v2863, %v2864
        %v2866 = vrot.slane %v2865, 2
        %v2867 = vadd.f32 %v2865, %v2866
        %v2868 = vrot.slane %v2867, 1
        %v2869 = vadd.f32 %v2867, %v2868
        %v2870 = vsel %vm2800, %v2576, 0.0
        %v2871 = vsel %vm2800, %v2577, 0.0
        %v2872 = vadd.f32 %v2870, %v2871
        %v2873 = vsel %vm2800, %v2578, 0.0
        %v2874 = vadd.f32 %v2872, %v2873
        %v2875 = vsel %vm2800, %v2579, 0.0
        %v2876 = vadd.f32 %v2874, %v2875
        %v2877 = vsel %vm2800, %v2580, 0.0
        %v2878 = vadd.f32 %v2876, %v2877
        %v2879 = vsel %vm2800, %v2581, 0.0
        %v2880 = vadd.f32 %v2878, %v2879
        %v2881 = vsel %vm2800, %v2582, 0.0
        %v2882 = vadd.f32 %v2880, %v2881
        %v2883 = vsel %vm2800, %v2583, 0.0
        %v2884 = vadd.f32 %v2882, %v2883
        %v2885 = vsel %vm2800, %v2584, 0.0
        %v2886 = vadd.f32 %v2884, %v2885
        %v2887 = vsel %vm2800, %v2585, 0.0
        %v2888 = vadd.f32 %v2886, %v2887
        %v2889 = vsel %vm2800, %v2586, 0.0
        %v2890 = vadd.f32 %v2888, %v2889
        %v2891 = vsel %vm2800, %v2587, 0.0
        %v2892 = vadd.f32 %v2890, %v2891
        %v2893 = vsel %vm2800, %v2588, 0.0
        %v2894 = vadd.f32 %v2892, %v2893
        %v2895 = vsel %vm2800, %v2589, 0.0
        %v2896 = vadd.f32 %v2894, %v2895
        %v2897 = vsel %vm2800, %v2590, 0.0
        %v2898 = vadd.f32 %v2896, %v2897
        %v2899 = vsel %vm2800, %v2591, 0.0
        %v2900 = vadd.f32 %v2898, %v2899
        %v2901 = vsel %vm2800, %v2592, 0.0
        %v2902 = vadd.f32 %v2900, %v2901
        %v2903 = vsel %vm2800, %v2593, 0.0
        %v2904 = vadd.f32 %v2902, %v2903
        %v2905 = vsel %vm2800, %v2594, 0.0
        %v2906 = vadd.f32 %v2904, %v2905
        %v2907 = vsel %vm2800, %v2595, 0.0
        %v2908 = vadd.f32 %v2906, %v2907
        %v2909 = vsel %vm2800, %v2596, 0.0
        %v2910 = vadd.f32 %v2908, %v2909
        %v2911 = vsel %vm2800, %v2597, 0.0
        %v2912 = vadd.f32 %v2910, %v2911
        %v2913 = vsel %vm2800, %v2598, 0.0
        %v2914 = vadd.f32 %v2912, %v2913
        %v2915 = vsel %vm2800, %v2599, 0.0
        %v2916 = vadd.f32 %v2914, %v2915
        %v2917 = vsel %vm2800, %v2600, 0.0
        %v2918 = vadd.f32 %v2916, %v2917
        %v2919 = vsel %vm2800, %v2601, 0.0
        %v2920 = vadd.f32 %v2918, %v2919
        %v2921 = vsel %vm2800, %v2602, 0.0
        %v2922 = vadd.f32 %v2920, %v2921
        %v2923 = vsel %vm2800, %v2603, 0.0
        %v2924 = vadd.f32 %v2922, %v2923
        %v2925 = vsel %vm2800, %v2604, 0.0
        %v2926 = vadd.f32 %v2924, %v2925
        %v2927 = vsel %vm2800, %v2605, 0.0
        %v2928 = vadd.f32 %v2926, %v2927
        %v2929 = vsel %vm2800, %v2606, 0.0
        %v2930 = vadd.f32 %v2928, %v2929
        %v2931 = vsel %vm2800, %v2607, 0.0
        %v2932 = vadd.f32 %v2930, %v2931
        %v2933 = vrot.slane %v2932, 4
        %v2934 = vadd.f32 %v2932, %v2933
        %v2935 = vrot.slane %v2934, 2
        %v2936 = vadd.f32 %v2934, %v2935
        %v2937 = vrot.slane %v2936, 1
        %v2938 = vadd.f32 %v2936, %v2937
        %v2939 = vsel %vm2800, %v2608, 0.0
        %v2940 = vsel %vm2800, %v2609, 0.0
        %v2941 = vadd.f32 %v2939, %v2940
        %v2942 = vsel %vm2800, %v2610, 0.0
        %v2943 = vadd.f32 %v2941, %v2942
        %v2944 = vsel %vm2800, %v2611, 0.0
        %v2945 = vadd.f32 %v2943, %v2944
        %v2946 = vsel %vm2800, %v2612, 0.0
        %v2947 = vadd.f32 %v2945, %v2946
        %v2948 = vsel %vm2800, %v2613, 0.0
        %v2949 = vadd.f32 %v2947, %v2948
        %v2950 = vsel %vm2800, %v2614, 0.0
        %v2951 = vadd.f32 %v2949, %v2950
        %v2952 = vsel %vm2800, %v2615, 0.0
        %v2953 = vadd.f32 %v2951, %v2952
        %v2954 = vsel %vm2800, %v2616, 0.0
        %v2955 = vadd.f32 %v2953, %v2954
        %v2956 = vsel %vm2800, %v2617, 0.0
        %v2957 = vadd.f32 %v2955, %v2956
        %v2958 = vsel %vm2800, %v2618, 0.0
        %v2959 = vadd.f32 %v2957, %v2958
        %v2960 = vsel %vm2800, %v2619, 0.0
        %v2961 = vadd.f32 %v2959, %v2960
        %v2962 = vsel %vm2800, %v2620, 0.0
        %v2963 = vadd.f32 %v2961, %v2962
        %v2964 = vsel %vm2800, %v2621, 0.0
        %v2965 = vadd.f32 %v2963, %v2964
        %v2966 = vsel %vm2800, %v2622, 0.0
        %v2967 = vadd.f32 %v2965, %v2966
        %v2968 = vsel %vm2800, %v2623, 0.0
        %v2969 = vadd.f32 %v2967, %v2968
        %v2970 = vsel %vm2800, %v2624, 0.0
        %v2971 = vadd.f32 %v2969, %v2970
        %v2972 = vsel %vm2800, %v2625, 0.0
        %v2973 = vadd.f32 %v2971, %v2972
        %v2974 = vsel %vm2800, %v2626, 0.0
        %v2975 = vadd.f32 %v2973, %v2974
        %v2976 = vsel %vm2800, %v2627, 0.0
        %v2977 = vadd.f32 %v2975, %v2976
        %v2978 = vsel %vm2800, %v2628, 0.0
        %v2979 = vadd.f32 %v2977, %v2978
        %v2980 = vsel %vm2800, %v2629, 0.0
        %v2981 = vadd.f32 %v2979, %v2980
        %v2982 = vsel %vm2800, %v2630, 0.0
        %v2983 = vadd.f32 %v2981, %v2982
        %v2984 = vsel %vm2800, %v2631, 0.0
        %v2985 = vadd.f32 %v2983, %v2984
        %v2986 = vsel %vm2800, %v2632, 0.0
        %v2987 = vadd.f32 %v2985, %v2986
        %v2988 = vsel %vm2800, %v2633, 0.0
        %v2989 = vadd.f32 %v2987, %v2988
        %v2990 = vsel %vm2800, %v2634, 0.0
        %v2991 = vadd.f32 %v2989, %v2990
        %v2992 = vsel %vm2800, %v2635, 0.0
        %v2993 = vadd.f32 %v2991, %v2992
        %v2994 = vsel %vm2800, %v2636, 0.0
        %v2995 = vadd.f32 %v2993, %v2994
        %v2996 = vsel %vm2800, %v2637, 0.0
        %v2997 = vadd.f32 %v2995, %v2996
        %v2998 = vsel %vm2800, %v2638, 0.0
        %v2999 = vadd.f32 %v2997, %v2998
        %v3000 = vsel %vm2800, %v2639, 0.0
        %v3001 = vadd.f32 %v2999, %v3000
        %v3002 = vrot.slane %v3001, 4
        %v3003 = vadd.f32 %v3001, %v3002
        %v3004 = vrot.slane %v3003, 2
        %v3005 = vadd.f32 %v3003, %v3004
        %v3006 = vrot.slane %v3005, 1
        %v3007 = vadd.f32 %v3005, %v3006
        %v3008 = vsel %vm2800, %v2640, 0.0
        %v3009 = vsel %vm2800, %v2641, 0.0
        %v3010 = vadd.f32 %v3008, %v3009
        %v3011 = vsel %vm2800, %v2642, 0.0
        %v3012 = vadd.f32 %v3010, %v3011
        %v3013 = vsel %vm2800, %v2643, 0.0
        %v3014 = vadd.f32 %v3012, %v3013
        %v3015 = vsel %vm2800, %v2644, 0.0
        %v3016 = vadd.f32 %v3014, %v3015
        %v3017 = vsel %vm2800, %v2645, 0.0
        %v3018 = vadd.f32 %v3016, %v3017
        %v3019 = vsel %vm2800, %v2646, 0.0
        %v3020 = vadd.f32 %v3018, %v3019
        %v3021 = vsel %vm2800, %v2647, 0.0
        %v3022 = vadd.f32 %v3020, %v3021
        %v3023 = vsel %vm2800, %v2648, 0.0
        %v3024 = vadd.f32 %v3022, %v3023
        %v3025 = vsel %vm2800, %v2649, 0.0
        %v3026 = vadd.f32 %v3024, %v3025
        %v3027 = vsel %vm2800, %v2650, 0.0
        %v3028 = vadd.f32 %v3026, %v3027
        %v3029 = vsel %vm2800, %v2651, 0.0
        %v3030 = vadd.f32 %v3028, %v3029
        %v3031 = vsel %vm2800, %v2652, 0.0
        %v3032 = vadd.f32 %v3030, %v3031
        %v3033 = vsel %vm2800, %v2653, 0.0
        %v3034 = vadd.f32 %v3032, %v3033
        %v3035 = vsel %vm2800, %v2654, 0.0
        %v3036 = vadd.f32 %v3034, %v3035
        %v3037 = vsel %vm2800, %v2655, 0.0
        %v3038 = vadd.f32 %v3036, %v3037
        %v3039 = vsel %vm2800, %v2656, 0.0
        %v3040 = vadd.f32 %v3038, %v3039
        %v3041 = vsel %vm2800, %v2657, 0.0
        %v3042 = vadd.f32 %v3040, %v3041
        %v3043 = vsel %vm2800, %v2658, 0.0
        %v3044 = vadd.f32 %v3042, %v3043
        %v3045 = vsel %vm2800, %v2659, 0.0
        %v3046 = vadd.f32 %v3044, %v3045
        %v3047 = vsel %vm2800, %v2660, 0.0
        %v3048 = vadd.f32 %v3046, %v3047
        %v3049 = vsel %vm2800, %v2661, 0.0
        %v3050 = vadd.f32 %v3048, %v3049
        %v3051 = vsel %vm2800, %v2662, 0.0
        %v3052 = vadd.f32 %v3050, %v3051
        %v3053 = vsel %vm2800, %v2663, 0.0
        %v3054 = vadd.f32 %v3052, %v3053
        %v3055 = vsel %vm2800, %v2664, 0.0
        %v3056 = vadd.f32 %v3054, %v3055
        %v3057 = vsel %vm2800, %v2665, 0.0
        %v3058 = vadd.f32 %v3056, %v3057
        %v3059 = vsel %vm2800, %v2666, 0.0
        %v3060 = vadd.f32 %v3058, %v3059
        %v3061 = vsel %vm2800, %v2667, 0.0
        %v3062 = vadd.f32 %v3060, %v3061
        %v3063 = vsel %vm2800, %v2668, 0.0
        %v3064 = vadd.f32 %v3062, %v3063
        %v3065 = vsel %vm2800, %v2669, 0.0
        %v3066 = vadd.f32 %v3064, %v3065
        %v3067 = vsel %vm2800, %v2670, 0.0
        %v3068 = vadd.f32 %v3066, %v3067
        %v3069 = vsel %vm2800, %v2671, 0.0
        %v3070 = vadd.f32 %v3068, %v3069
        %v3071 = vrot.slane %v3070, 4
        %v3072 = vadd.f32 %v3070, %v3071
        %v3073 = vrot.slane %v3072, 2
        %v3074 = vadd.f32 %v3072, %v3073
        %v3075 = vrot.slane %v3074, 1
        %v3076 = vadd.f32 %v3074, %v3075
        %v3077 = vsel %vm2800, %v2672, 0.0
        %v3078 = vsel %vm2800, %v2673, 0.0
        %v3079 = vadd.f32 %v3077, %v3078
        %v3080 = vsel %vm2800, %v2674, 0.0
        %v3081 = vadd.f32 %v3079, %v3080
        %v3082 = vsel %vm2800, %v2675, 0.0
        %v3083 = vadd.f32 %v3081, %v3082
        %v3084 = vsel %vm2800, %v2676, 0.0
        %v3085 = vadd.f32 %v3083, %v3084
        %v3086 = vsel %vm2800, %v2677, 0.0
        %v3087 = vadd.f32 %v3085, %v3086
        %v3088 = vsel %vm2800, %v2678, 0.0
        %v3089 = vadd.f32 %v3087, %v3088
        %v3090 = vsel %vm2800, %v2679, 0.0
        %v3091 = vadd.f32 %v3089, %v3090
        %v3092 = vsel %vm2800, %v2680, 0.0
        %v3093 = vadd.f32 %v3091, %v3092
        %v3094 = vsel %vm2800, %v2681, 0.0
        %v3095 = vadd.f32 %v3093, %v3094
        %v3096 = vsel %vm2800, %v2682, 0.0
        %v3097 = vadd.f32 %v3095, %v3096
        %v3098 = vsel %vm2800, %v2683, 0.0
        %v3099 = vadd.f32 %v3097, %v3098
        %v3100 = vsel %vm2800, %v2684, 0.0
        %v3101 = vadd.f32 %v3099, %v3100
        %v3102 = vsel %vm2800, %v2685, 0.0
        %v3103 = vadd.f32 %v3101, %v3102
        %v3104 = vsel %vm2800, %v2686, 0.0
        %v3105 = vadd.f32 %v3103, %v3104
        %v3106 = vsel %vm2800, %v2687, 0.0
        %v3107 = vadd.f32 %v3105, %v3106
        %v3108 = vsel %vm2800, %v2688, 0.0
        %v3109 = vadd.f32 %v3107, %v3108
        %v3110 = vsel %vm2800, %v2689, 0.0
        %v3111 = vadd.f32 %v3109, %v3110
        %v3112 = vsel %vm2800, %v2690, 0.0
        %v3113 = vadd.f32 %v3111, %v3112
        %v3114 = vsel %vm2800, %v2691, 0.0
        %v3115 = vadd.f32 %v3113, %v3114
        %v3116 = vsel %vm2800, %v2692, 0.0
        %v3117 = vadd.f32 %v3115, %v3116
        %v3118 = vsel %vm2800, %v2693, 0.0
        %v3119 = vadd.f32 %v3117, %v3118
        %v3120 = vsel %vm2800, %v2694, 0.0
        %v3121 = vadd.f32 %v3119, %v3120
        %v3122 = vsel %vm2800, %v2695, 0.0
        %v3123 = vadd.f32 %v3121, %v3122
        %v3124 = vsel %vm2800, %v2696, 0.0
        %v3125 = vadd.f32 %v3123, %v3124
        %v3126 = vsel %vm2800, %v2697, 0.0
        %v3127 = vadd.f32 %v3125, %v3126
        %v3128 = vsel %vm2800, %v2698, 0.0
        %v3129 = vadd.f32 %v3127, %v3128
        %v3130 = vsel %vm2800, %v2699, 0.0
        %v3131 = vadd.f32 %v3129, %v3130
        %v3132 = vsel %vm2800, %v2700, 0.0
        %v3133 = vadd.f32 %v3131, %v3132
        %v3134 = vsel %vm2800, %v2701, 0.0
        %v3135 = vadd.f32 %v3133, %v3134
        %v3136 = vsel %vm2800, %v2702, 0.0
        %v3137 = vadd.f32 %v3135, %v3136
        %v3138 = vsel %vm2800, %v2703, 0.0
        %v3139 = vadd.f32 %v3137, %v3138
        %v3140 = vrot.slane %v3139, 4
        %v3141 = vadd.f32 %v3139, %v3140
        %v3142 = vrot.slane %v3141, 2
        %v3143 = vadd.f32 %v3141, %v3142
        %v3144 = vrot.slane %v3143, 1
        %v3145 = vadd.f32 %v3143, %v3144
        %v3146 = vsel %vm2800, %v2704, 0.0
        %v3147 = vsel %vm2800, %v2705, 0.0
        %v3148 = vadd.f32 %v3146, %v3147
        %v3149 = vsel %vm2800, %v2706, 0.0
        %v3150 = vadd.f32 %v3148, %v3149
        %v3151 = vsel %vm2800, %v2707, 0.0
        %v3152 = vadd.f32 %v3150, %v3151
        %v3153 = vsel %vm2800, %v2708, 0.0
        %v3154 = vadd.f32 %v3152, %v3153
        %v3155 = vsel %vm2800, %v2709, 0.0
        %v3156 = vadd.f32 %v3154, %v3155
        %v3157 = vsel %vm2800, %v2710, 0.0
        %v3158 = vadd.f32 %v3156, %v3157
        %v3159 = vsel %vm2800, %v2711, 0.0
        %v3160 = vadd.f32 %v3158, %v3159
        %v3161 = vsel %vm2800, %v2712, 0.0
        %v3162 = vadd.f32 %v3160, %v3161
        %v3163 = vsel %vm2800, %v2713, 0.0
        %v3164 = vadd.f32 %v3162, %v3163
        %v3165 = vsel %vm2800, %v2714, 0.0
        %v3166 = vadd.f32 %v3164, %v3165
        %v3167 = vsel %vm2800, %v2715, 0.0
        %v3168 = vadd.f32 %v3166, %v3167
        %v3169 = vsel %vm2800, %v2716, 0.0
        %v3170 = vadd.f32 %v3168, %v3169
        %v3171 = vsel %vm2800, %v2717, 0.0
        %v3172 = vadd.f32 %v3170, %v3171
        %v3173 = vsel %vm2800, %v2718, 0.0
        %v3174 = vadd.f32 %v3172, %v3173
        %v3175 = vsel %vm2800, %v2719, 0.0
        %v3176 = vadd.f32 %v3174, %v3175
        %v3177 = vsel %vm2800, %v2720, 0.0
        %v3178 = vadd.f32 %v3176, %v3177
        %v3179 = vsel %vm2800, %v2721, 0.0
        %v3180 = vadd.f32 %v3178, %v3179
        %v3181 = vsel %vm2800, %v2722, 0.0
        %v3182 = vadd.f32 %v3180, %v3181
        %v3183 = vsel %vm2800, %v2723, 0.0
        %v3184 = vadd.f32 %v3182, %v3183
        %v3185 = vsel %vm2800, %v2724, 0.0
        %v3186 = vadd.f32 %v3184, %v3185
        %v3187 = vsel %vm2800, %v2725, 0.0
        %v3188 = vadd.f32 %v3186, %v3187
        %v3189 = vsel %vm2800, %v2726, 0.0
        %v3190 = vadd.f32 %v3188, %v3189
        %v3191 = vsel %vm2800, %v2727, 0.0
        %v3192 = vadd.f32 %v3190, %v3191
        %v3193 = vsel %vm2800, %v2728, 0.0
        %v3194 = vadd.f32 %v3192, %v3193
        %v3195 = vsel %vm2800, %v2729, 0.0
        %v3196 = vadd.f32 %v3194, %v3195
        %v3197 = vsel %vm2800, %v2730, 0.0
        %v3198 = vadd.f32 %v3196, %v3197
        %v3199 = vsel %vm2800, %v2731, 0.0
        %v3200 = vadd.f32 %v3198, %v3199
        %v3201 = vsel %vm2800, %v2732, 0.0
        %v3202 = vadd.f32 %v3200, %v3201
        %v3203 = vsel %vm2800, %v2733, 0.0
        %v3204 = vadd.f32 %v3202, %v3203
        %v3205 = vsel %vm2800, %v2734, 0.0
        %v3206 = vadd.f32 %v3204, %v3205
        %v3207 = vsel %vm2800, %v2735, 0.0
        %v3208 = vadd.f32 %v3206, %v3207
        %v3209 = vrot.slane %v3208, 4
        %v3210 = vadd.f32 %v3208, %v3209
        %v3211 = vrot.slane %v3210, 2
        %v3212 = vadd.f32 %v3210, %v3211
        %v3213 = vrot.slane %v3212, 1
        %v3214 = vadd.f32 %v3212, %v3213
        %v3215 = vsel %vm2800, %v2736, 0.0
        %v3216 = vsel %vm2800, %v2737, 0.0
        %v3217 = vadd.f32 %v3215, %v3216
        %v3218 = vsel %vm2800, %v2738, 0.0
        %v3219 = vadd.f32 %v3217, %v3218
        %v3220 = vsel %vm2800, %v2739, 0.0
        %v3221 = vadd.f32 %v3219, %v3220
        %v3222 = vsel %vm2800, %v2740, 0.0
        %v3223 = vadd.f32 %v3221, %v3222
        %v3224 = vsel %vm2800, %v2741, 0.0
        %v3225 = vadd.f32 %v3223, %v3224
        %v3226 = vsel %vm2800, %v2742, 0.0
        %v3227 = vadd.f32 %v3225, %v3226
        %v3228 = vsel %vm2800, %v2743, 0.0
        %v3229 = vadd.f32 %v3227, %v3228
        %v3230 = vsel %vm2800, %v2744, 0.0
        %v3231 = vadd.f32 %v3229, %v3230
        %v3232 = vsel %vm2800, %v2745, 0.0
        %v3233 = vadd.f32 %v3231, %v3232
        %v3234 = vsel %vm2800, %v2746, 0.0
        %v3235 = vadd.f32 %v3233, %v3234
        %v3236 = vsel %vm2800, %v2747, 0.0
        %v3237 = vadd.f32 %v3235, %v3236
        %v3238 = vsel %vm2800, %v2748, 0.0
        %v3239 = vadd.f32 %v3237, %v3238
        %v3240 = vsel %vm2800, %v2749, 0.0
        %v3241 = vadd.f32 %v3239, %v3240
        %v3242 = vsel %vm2800, %v2750, 0.0
        %v3243 = vadd.f32 %v3241, %v3242
        %v3244 = vsel %vm2800, %v2751, 0.0
        %v3245 = vadd.f32 %v3243, %v3244
        %v3246 = vsel %vm2800, %v2752, 0.0
        %v3247 = vadd.f32 %v3245, %v3246
        %v3248 = vsel %vm2800, %v2753, 0.0
        %v3249 = vadd.f32 %v3247, %v3248
        %v3250 = vsel %vm2800, %v2754, 0.0
        %v3251 = vadd.f32 %v3249, %v3250
        %v3252 = vsel %vm2800, %v2755, 0.0
        %v3253 = vadd.f32 %v3251, %v3252
        %v3254 = vsel %vm2800, %v2756, 0.0
        %v3255 = vadd.f32 %v3253, %v3254
        %v3256 = vsel %vm2800, %v2757, 0.0
        %v3257 = vadd.f32 %v3255, %v3256
        %v3258 = vsel %vm2800, %v2758, 0.0
        %v3259 = vadd.f32 %v3257, %v3258
        %v3260 = vsel %vm2800, %v2759, 0.0
        %v3261 = vadd.f32 %v3259, %v3260
        %v3262 = vsel %vm2800, %v2760, 0.0
        %v3263 = vadd.f32 %v3261, %v3262
        %v3264 = vsel %vm2800, %v2761, 0.0
        %v3265 = vadd.f32 %v3263, %v3264
        %v3266 = vsel %vm2800, %v2762, 0.0
        %v3267 = vadd.f32 %v3265, %v3266
        %v3268 = vsel %vm2800, %v2763, 0.0
        %v3269 = vadd.f32 %v3267, %v3268
        %v3270 = vsel %vm2800, %v2764, 0.0
        %v3271 = vadd.f32 %v3269, %v3270
        %v3272 = vsel %vm2800, %v2765, 0.0
        %v3273 = vadd.f32 %v3271, %v3272
        %v3274 = vsel %vm2800, %v2766, 0.0
        %v3275 = vadd.f32 %v3273, %v3274
        %v3276 = vsel %vm2800, %v2767, 0.0
        %v3277 = vadd.f32 %v3275, %v3276
        %v3278 = vrot.slane %v3277, 4
        %v3279 = vadd.f32 %v3277, %v3278
        %v3280 = vrot.slane %v3279, 2
        %v3281 = vadd.f32 %v3279, %v3280
        %v3282 = vrot.slane %v3281, 1
        %v3283 = vadd.f32 %v3281, %v3282
        %v3284 = vsel %vm2800, %v2768, 0.0
        %v3285 = vsel %vm2800, %v2769, 0.0
        %v3286 = vadd.f32 %v3284, %v3285
        %v3287 = vsel %vm2800, %v2770, 0.0
        %v3288 = vadd.f32 %v3286, %v3287
        %v3289 = vsel %vm2800, %v2771, 0.0
        %v3290 = vadd.f32 %v3288, %v3289
        %v3291 = vsel %vm2800, %v2772, 0.0
        %v3292 = vadd.f32 %v3290, %v3291
        %v3293 = vsel %vm2800, %v2773, 0.0
        %v3294 = vadd.f32 %v3292, %v3293
        %v3295 = vsel %vm2800, %v2774, 0.0
        %v3296 = vadd.f32 %v3294, %v3295
        %v3297 = vsel %vm2800, %v2775, 0.0
        %v3298 = vadd.f32 %v3296, %v3297
        %v3299 = vsel %vm2800, %v2776, 0.0
        %v3300 = vadd.f32 %v3298, %v3299
        %v3301 = vsel %vm2800, %v2777, 0.0
        %v3302 = vadd.f32 %v3300, %v3301
        %v3303 = vsel %vm2800, %v2778, 0.0
        %v3304 = vadd.f32 %v3302, %v3303
        %v3305 = vsel %vm2800, %v2779, 0.0
        %v3306 = vadd.f32 %v3304, %v3305
        %v3307 = vsel %vm2800, %v2780, 0.0
        %v3308 = vadd.f32 %v3306, %v3307
        %v3309 = vsel %vm2800, %v2781, 0.0
        %v3310 = vadd.f32 %v3308, %v3309
        %v3311 = vsel %vm2800, %v2782, 0.0
        %v3312 = vadd.f32 %v3310, %v3311
        %v3313 = vsel %vm2800, %v2783, 0.0
        %v3314 = vadd.f32 %v3312, %v3313
        %v3315 = vsel %vm2800, %v2784, 0.0
        %v3316 = vadd.f32 %v3314, %v3315
        %v3317 = vsel %vm2800, %v2785, 0.0
        %v3318 = vadd.f32 %v3316, %v3317
        %v3319 = vsel %vm2800, %v2786, 0.0
        %v3320 = vadd.f32 %v3318, %v3319
        %v3321 = vsel %vm2800, %v2787, 0.0
        %v3322 = vadd.f32 %v3320, %v3321
        %v3323 = vsel %vm2800, %v2788, 0.0
        %v3324 = vadd.f32 %v3322, %v3323
        %v3325 = vsel %vm2800, %v2789, 0.0
        %v3326 = vadd.f32 %v3324, %v3325
        %v3327 = vsel %vm2800, %v2790, 0.0
        %v3328 = vadd.f32 %v3326, %v3327
        %v3329 = vsel %vm2800, %v2791, 0.0
        %v3330 = vadd.f32 %v3328, %v3329
        %v3331 = vsel %vm2800, %v2792, 0.0
        %v3332 = vadd.f32 %v3330, %v3331
        %v3333 = vsel %vm2800, %v2793, 0.0
        %v3334 = vadd.f32 %v3332, %v3333
        %v3335 = vsel %vm2800, %v2794, 0.0
        %v3336 = vadd.f32 %v3334, %v3335
        %v3337 = vsel %vm2800, %v2795, 0.0
        %v3338 = vadd.f32 %v3336, %v3337
        %v3339 = vsel %vm2800, %v2796, 0.0
        %v3340 = vadd.f32 %v3338, %v3339
        %v3341 = vsel %vm2800, %v2797, 0.0
        %v3342 = vadd.f32 %v3340, %v3341
        %v3343 = vsel %vm2800, %v2798, 0.0
        %v3344 = vadd.f32 %v3342, %v3343
        %v3345 = vsel %vm2800, %v2799, 0.0
        %v3346 = vadd.f32 %v3344, %v3345
        %v3347 = vrot.slane %v3346, 4
        %v3348 = vadd.f32 %v3346, %v3347
        %v3349 = vrot.slane %v3348, 2
        %v3350 = vadd.f32 %v3348, %v3349
        %v3351 = vrot.slane %v3350, 1
        %v3352 = vadd.f32 %v3350, %v3351
        %v3353 = vrcp.pop 256.0
        %v3354 = vmul.f32 %v2869, %v3353
        %v3355 = vmul.f32 %v2938, %v3353
        %v3356 = vmul.f32 %v3007, %v3353
        %v3357 = vmul.f32 %v3076, %v3353
        %v3358 = vmul.f32 %v3145, %v3353
        %v3359 = vmul.f32 %v3214, %v3353
        %v3360 = vmul.f32 %v3283, %v3353
        %v3361 = vmul.f32 %v3352, %v3353
        %vm3370 = vcmask 1041409
        %v3371 = vsel %vm3370, %v3355, %v3354
        %vm3372 = vcmask 1042434
        %v3373 = vsel %vm3372, %v3356, %v3371
        %vm3374 = vcmask 1043459
        %v3375 = vsel %vm3374, %v3357, %v3373
        %vm3376 = vcmask 1044484
        %v3377 = vsel %vm3376, %v3358, %v3375
        %vm3378 = vcmask 1045509
        %v3379 = vsel %vm3378, %v3359, %v3377
        %vm3380 = vcmask 1046534
        %v3381 = vsel %vm3380, %v3360, %v3379
        %vm3382 = vcmask 1047559
        %v3383 = vsel %vm3382, %v3361, %v3381
        %3385 = vst.msk [vmem:[%s166] sm:$0xff] %vm2800, %v3383
        %s3386 = sand.u32 %s93, 1
        %s3387 = scalar_lea.sflag [#allocation3], %s3386
        %s3388 = sand.u32 %s93, 1
        %s3389 = smul.addr %s3388, 8
        %s3390 = scalar_lea.vmem [#allocation2], %s3389
        // Predicated region
        $region33: #{tpu_custom_call.1} parent=31 // pred_check
          %p3391 = pneg %p103
        $region34: #{tpu_custom_call.1} parent=31 // pred_check_branch
          %3393 = sbr.rel (%p3391) target = $region36
        $region35: #{tpu_custom_call.1} parent=31 // pred_region
          %s3395 = ssub.s32 128, 128
          %3396 = vsyncadd %s3387, %s3395
          %s3397 = smul.addr %s17, 128
          %s3398 = scalar_lea.hbm %s3, %s3397
          %s3400 = sshll.u32 %s3390, 4
          %s3401 = int_to_ptr.vmem [resolvable:$true] %s3400
          %3403 = dma.vmem_to_hbm [thread:$0]  %s3401, 128, %s3398, %s3387
        $region36: #{tpu_custom_call.1} parent=31 // pred_fallthru
          _
      $region32: #{tpu_custom_call.1} parent=5 // pred_fallthru
        _
      %p3404 = scmp.le.s32.totalorder 2, %s12
      // Predicated region
      $region37: #{tpu_custom_call.1} parent=5 // pred_check
        %p3405 = pneg %p3404
      $region38: #{tpu_custom_call.1} parent=5 // pred_check_branch
        %3407 = sbr.rel (%p3405) target = $region40
      $region39: #{tpu_custom_call.1} parent=5 // pred_region
        %s3408 = ssub.s32 %s12, 2
        // Predicated region
        $region41: #{tpu_custom_call.1} parent=39 // pred_check
          %p3409 = pneg %p109
        $region42: #{tpu_custom_call.1} parent=39 // pred_check_branch
          %3411 = sbr.rel (%p3409) target = $region44
        $region43: #{tpu_custom_call.1} parent=39 // pred_region
          %s3412 = sand.u32 %s94, 1
          %s3413 = scalar_lea.sflag [#allocation3], %s3412
          %s3414 = sand.u32 %s94, 1
          %s3415 = smul.addr %s3414, 8
          %s3416 = scalar_lea.vmem [#allocation2], %s3415
          %3417 = dma.done %s3413, 128
        $region44: #{tpu_custom_call.1} parent=39 // pred_fallthru
          _
      $region40: #{tpu_custom_call.1} parent=5 // pred_fallthru
        _
    $region6: #{tpu_custom_call.1} parent=1 // loop_footer
      %s16 = sadd.s32 1, %s12
    $region7: #{tpu_custom_call.1} parent=1 // loop_footer_branch
      %11 = sbr.rel target = $region3
    $region8: #{tpu_custom_call.1} parent=1 // loop_exit
      _
    %3418 = vsyncpa [#allocation3], 1
    %s3419 = scalar_lea.sflag [#allocation3], 1
    %3420 = vsyncpa %s3419, 1

</llo_original>
